<compile_context>
chip_gen: v5e
topology: v5e:2x2
jax: 0.10.0
libtpu: 0.0.40
codegen_flags: <defaults>
</compile_context>

<pallas_src>
import functools

import numpy as np
import jax
import jax.numpy as jnp
from jax import lax
from jax.experimental import pallas as pl
from jax.experimental.pallas import tpu as pltpu


# ----------------------------------------------------------------------------
# Pallas kernel: one GATConv layer, all heads fused, one dst-node tile per step
# ----------------------------------------------------------------------------
def _gat_layer_kernel(x_dst_ref, x_all_ref, w_ref, asrc_ref, adst_ref,
                      adj_ref, out_ref, *, heads, out_ch):
    # x_dst_ref: [TN, F_in]   destination-node tile features
    # x_all_ref: [N,  F_in]   all (source) node features
    # w_ref:     [F_in, H*C]  projection for all heads
    # asrc_ref:  [H, C], adst_ref: [H, C]
    # adj_ref:   [TN, N] int8 adjacency mask, adj[dst, src]
    # out_ref:   [TN, H*C]    concatenated per-head outputs (lane-dense)
    x_dst = x_dst_ref[...]
    x_all = x_all_ref[...]
    w = w_ref[...]

    # Single MXU matmul covering all heads (default precision).
    xw_dst = jnp.dot(x_dst, w, preferred_element_type=jnp.float32)   # [TN, H*C]
    xw_all = jnp.dot(x_all, w, preferred_element_type=jnp.float32)   # [N,  H*C]

    mask = adj_ref[...] != 0                                          # [TN, N]

    a_src_all = asrc_ref[...]                                         # [H, C]
    a_dst_all = adst_ref[...]                                         # [H, C]

    tn = x_dst.shape[0]
    ones_col = jnp.ones((tn, 1), jnp.float32)

    outs = []
    for h in range(heads):                       # static unroll over heads
        lo, hi = h * out_ch, (h + 1) * out_ch
        xw_d = xw_dst[:, lo:hi]                  # [TN, C]
        xw_s = xw_all[:, lo:hi]                  # [N,  C]
        a_s = a_src_all[h:h + 1, :]              # [1, C]
        a_d = a_dst_all[h:h + 1, :]              # [1, C]

        alpha_dst = jnp.sum(xw_d * a_d, axis=1, keepdims=True)        # [TN, 1]
        alpha_src = jnp.sum(xw_s * a_s, axis=1, keepdims=True)        # [N, 1]

        # Rank-1 outer product: src_mat[i, j] = alpha_src[j]  (K=1 matmul).
        src_mat = lax.dot_general(
            ones_col, alpha_src,
            dimension_numbers=(((1,), (1,)), ((), ())),
            preferred_element_type=jnp.float32)                        # [TN, N]

        # e[i, j] = LeakyReLU(alpha_dst[i] + alpha_src[j], 0.2), masked.
        e = alpha_dst + src_mat
        e = jnp.where(e > 0, e, 0.2 * e)
        e = jnp.where(mask, e, -1e30)

        # Softmax over source nodes j (masked entries -> exp(-huge) == 0).
        m = jnp.max(e, axis=1, keepdims=True)
        p = jnp.exp(e - m)
        denom = jnp.sum(p, axis=1, keepdims=True)
        attn = p * pl.reciprocal(denom, approx=True)                   # [TN, N]

        # Aggregate messages for this head (MXU).
        outs.append(jnp.dot(attn, xw_s, preferred_element_type=jnp.float32))

    # One lane-dense store of the concatenated per-head outputs.
    out_ref[...] = jnp.concatenate(outs, axis=1)


# ----------------------------------------------------------------------------
# Wrapper: one GATConv layer
# ----------------------------------------------------------------------------
def gat_conv(x, adj, W, att_src, att_dst, bias, *, heads, out_ch, concat,
             tile_n=None):
    """x: [N, F_in], adj: [N, N] int8 (adj[dst, src]), W: [F_in, heads*out_ch],
    att_src/att_dst: [heads, 1, out_ch], bias: [heads*out_ch] or [out_ch]."""
    N, F_in = x.shape
    HC = heads * out_ch

    if tile_n is None:
        tile_n = N
        for cand in (256, 128):                 # keep VMEM bounded on v7x
            if N > cand and N % cand == 0:
                tile_n = cand
                break
    assert N % tile_n == 0

    a_s = att_src.reshape(heads, out_ch).astype(jnp.float32)
    a_d = att_dst.reshape(heads, out_ch).astype(jnp.float32)

    kernel = functools.partial(_gat_layer_kernel, heads=heads, out_ch=out_ch)

    y = pl.pallas_call(
        kernel,
        out_shape=jax.ShapeDtypeStruct((N, HC), jnp.float32),
        grid_spec=pltpu.PrefetchScalarGridSpec(
            num_scalar_prefetch=0,
            grid=(N // tile_n,),
            in_specs=[
                pl.BlockSpec((tile_n, F_in), lambda i: (i, 0)),   # x (dst tile)
                pl.BlockSpec((N, F_in), lambda i: (0, 0)),        # x (all nodes)
                pl.BlockSpec((F_in, HC), lambda i: (0, 0)),       # W (all heads)
                pl.BlockSpec((heads, out_ch), lambda i: (0, 0)),  # att_src
                pl.BlockSpec((heads, out_ch), lambda i: (0, 0)),  # att_dst
                pl.BlockSpec((tile_n, N), lambda i: (i, 0)),      # adjacency rows
            ],
            out_specs=pl.BlockSpec((tile_n, HC), lambda i: (i, 0)),
        ),
        compiler_params=pltpu.CompilerParams(
            dimension_semantics=("parallel",)),
    )(x, x, W, a_s, a_d, adj)                                      # [N, H*C]

    if not concat:
        y = y.reshape(N, heads, out_ch).mean(axis=1)
    return y + bias


# ----------------------------------------------------------------------------
# Full GAT forward (eval mode: dropout = identity)
# ----------------------------------------------------------------------------
def gat_forward(x, adj, params, *, hidden, out_channels, out_heads):
    h = gat_conv(x, adj, params["W1"], params["as1"], params["ad1"],
                 params["b1"], heads=8, out_ch=hidden, concat=True)
    h = jax.nn.elu(h)
    out = gat_conv(h, adj, params["W2"], params["as2"], params["ad2"],
                   params["b2"], heads=out_heads, out_ch=out_channels,
                   concat=False)
    return out


# ----------------------------------------------------------------------------
# Pure-JAX reference (dense formulation) for validation
# ----------------------------------------------------------------------------
def _gat_conv_ref(x, adj, W, att_src, att_dst, bias, *, heads, out_ch, concat):
    N = x.shape[0]
    adj_f = adj.astype(jnp.float32)
    xw = (x @ W).reshape(N, heads, out_ch)
    a_src = jnp.einsum("nhc,hc->nh", xw, att_src[:, 0, :])
    a_dst = jnp.einsum("nhc,hc->nh", xw, att_dst[:, 0, :])
    e = a_dst[:, None, :] + a_src[None, :, :]          # [N_i, N_j, H]
    e = jnp.where(e > 0, e, 0.2 * e)
    e = jnp.where(adj_f[:, :, None] > 0, e, -jnp.inf)
    attn = jax.nn.softmax(e, axis=1)
    out = jnp.einsum("ijh,jhc->ihc", attn, xw)
    if concat:
        out = out.reshape(N, heads * out_ch)
    else:
        out = out.mean(axis=1)
    return out + bias


def _gat_forward_ref(x, adj, params, *, hidden, out_channels, out_heads):
    h = _gat_conv_ref(x, adj, params["W1"], params["as1"], params["ad1"],
                      params["b1"], heads=8, out_ch=hidden, concat=True)
    h = jax.nn.elu(h)
    return _gat_conv_ref(h, adj, params["W2"], params["as2"], params["ad2"],
                         params["b2"], heads=out_heads, out_ch=out_channels,
                         concat=False)


# ----------------------------------------------------------------------------
if __name__ == "__main__":
    # Small, forward-consistent shapes.
    N = 16              # number of graph nodes
    in_channels = 8
    hidden_channels = 8
    out_channels = 4
    heads1 = 8
    out_heads = 1

    key = jax.random.PRNGKey(0)
    k = jax.random.split(key, 9)

    # Deterministic synthetic parameters (PyG GATConv shapes).
    params = {
        "W1": 0.3 * jax.random.normal(k[0], (in_channels, heads1 * hidden_channels), jnp.float32),
        "as1": 0.3 * jax.random.normal(k[1], (heads1, 1, hidden_channels), jnp.float32),
        "ad1": 0.3 * jax.random.normal(k[2], (heads1, 1, hidden_channels), jnp.float32),
        "b1": 0.1 * jax.random.normal(k[3], (heads1 * hidden_channels,), jnp.float32),
        "W2": 0.3 * jax.random.normal(k[4], (heads1 * hidden_channels, out_heads * out_channels), jnp.float32),
        "as2": 0.3 * jax.random.normal(k[5], (out_heads, 1, out_channels), jnp.float32),
        "ad2": 0.3 * jax.random.normal(k[6], (out_heads, 1, out_channels), jnp.float32),
        "b2": 0.1 * jax.random.normal(k[7], (out_channels,), jnp.float32),
    }

    # Node features.
    x = jax.random.normal(k[8], (N, in_channels), jnp.float32)

    # Deterministic edge_index (source row 0, target row 1): bidirectional
    # ring plus a few chords.
    src, dst = [], []
    for i in range(N):
        src += [i, (i + 1) % N, i]
        dst += [(i + 1) % N, i, (i + 5) % N]
    edge_index = np.array([src, dst], dtype=np.int32)          # [2, 48]

    # Dense adjacency mask adj[dst, src] with self-loops (as GATConv adds),
    # stored as int8 to shrink the HBM->VMEM DMA footprint.
    adj_np = np.zeros((N, N), dtype=np.int8)
    adj_np[edge_index[1], edge_index[0]] = 1
    np.fill_diagonal(adj_np, 1)
    adj = jnp.asarray(adj_np)

    out = gat_forward(x, adj, params, hidden=hidden_channels,
                      out_channels=out_channels, out_heads=out_heads)
    out = jax.block_until_ready(out)

    ref = _gat_forward_ref(x, adj, params, hidden=hidden_channels,
                           out_channels=out_channels, out_heads=out_heads)
    ref = jax.block_until_ready(ref)

    assert out.shape == (N, out_channels), out.shape
    assert bool(jnp.all(jnp.isfinite(out)))
    # Both kernel and reference use default MXU precision (bf16 passes), plus
    # the approximate-reciprocal softmax; tolerance sized accordingly.
    np.testing.assert_allclose(np.asarray(out), np.asarray(ref),
                               rtol=2e-2, atol=5e-3)
    print("KERNEL_OK")
</pallas_src>

<mosaic_0001>
module attributes {stable_mosaic.version = 11 : i64} {
  func.func @_gat_layer_kernel(%arg0: i32, %arg1: memref<16x8xf32, #tpu.memory_space<vmem>>, %arg2: memref<16x8xf32, #tpu.memory_space<vmem>>, %arg3: memref<8x64xf32, #tpu.memory_space<vmem>>, %arg4: memref<8x8xf32, #tpu.memory_space<vmem>>, %arg5: memref<8x8xf32, #tpu.memory_space<vmem>>, %arg6: memref<16x16xi8, #tpu.memory_space<vmem>>, %arg7: memref<16x64xf32, #tpu.memory_space<vmem>>) attributes {dimension_semantics = [#tpu.dimension_semantics<parallel>], iteration_bounds = array<i64: 1>, scalar_prefetch = 0 : i64, scratch_operands = 0 : i64, tpu.core_type = #tpu.core_type<tc>, window_params = [{transform_indices = @transform_0, window_bounds = array<i64: 16, 8>}, {pipeline_mode = #tpu.pipeline_mode<synchronous>, transform_indices = @transform_1, window_bounds = array<i64: 16, 8>}, {pipeline_mode = #tpu.pipeline_mode<synchronous>, transform_indices = @transform_2, window_bounds = array<i64: 8, 64>}, {pipeline_mode = #tpu.pipeline_mode<synchronous>, transform_indices = @transform_3, window_bounds = array<i64: 8, 8>}, {pipeline_mode = #tpu.pipeline_mode<synchronous>, transform_indices = @transform_4, window_bounds = array<i64: 8, 8>}, {transform_indices = @transform_5, window_bounds = array<i64: 16, 16>}, {transform_indices = @transform_6, window_bounds = array<i64: 16, 64>}]} {
    %c0 = arith.constant 0 : index
    %c0_0 = arith.constant 0 : index
    %0 = vector.load %arg1[%c0, %c0_0] : memref<16x8xf32, #tpu.memory_space<vmem>>, vector<16x8xf32>
    %c0_1 = arith.constant 0 : index
    %c0_2 = arith.constant 0 : index
    %1 = vector.load %arg2[%c0_1, %c0_2] : memref<16x8xf32, #tpu.memory_space<vmem>>, vector<16x8xf32>
    %c0_3 = arith.constant 0 : index
    %c0_4 = arith.constant 0 : index
    %2 = vector.load %arg3[%c0_3, %c0_4] : memref<8x64xf32, #tpu.memory_space<vmem>>, vector<8x64xf32>
    %cst = arith.constant dense<0.000000e+00> : vector<16x64xf32>
    %3 = tpu.matmul %0, %2, %cst {dimension_numbers = #tpu.dot_dimension_numbers<[1], [0], [0], [1], [0, 0, 1, 1], [], []>} : vector<16x8xf32>, vector<8x64xf32>, vector<16x64xf32> -> vector<16x64xf32>
    %cst_5 = arith.constant dense<0.000000e+00> : vector<16x64xf32>
    %4 = tpu.matmul %1, %2, %cst_5 {dimension_numbers = #tpu.dot_dimension_numbers<[1], [0], [0], [1], [0, 0, 1, 1], [], []>} : vector<16x8xf32>, vector<8x64xf32>, vector<16x64xf32> -> vector<16x64xf32>
    %c0_6 = arith.constant 0 : index
    %c0_7 = arith.constant 0 : index
    %5 = vector.load %arg6[%c0_6, %c0_7] : memref<16x16xi8, #tpu.memory_space<vmem>>, vector<16x16xi8>
    %c0_i8 = arith.constant 0 : i8
    %6 = vector.broadcast %c0_i8 : i8 to vector<16x16xi8>
    %7 = arith.cmpi ne, %5, %6 : vector<16x16xi8>
    %c0_8 = arith.constant 0 : index
    %c0_9 = arith.constant 0 : index
    %8 = vector.load %arg4[%c0_8, %c0_9] : memref<8x8xf32, #tpu.memory_space<vmem>>, vector<8x8xf32>
    %c0_10 = arith.constant 0 : index
    %c0_11 = arith.constant 0 : index
    %9 = vector.load %arg5[%c0_10, %c0_11] : memref<8x8xf32, #tpu.memory_space<vmem>>, vector<8x8xf32>
    %cst_12 = arith.constant 1.000000e+00 : f32
    %10 = vector.broadcast %cst_12 : f32 to vector<16x1xf32>
    %11 = vector.extract_strided_slice %3 {offsets = [0, 0], sizes = [16, 8], strides = [1, 1]} : vector<16x64xf32> to vector<16x8xf32>
    %12 = vector.extract_strided_slice %4 {offsets = [0, 0], sizes = [16, 8], strides = [1, 1]} : vector<16x64xf32> to vector<16x8xf32>
    %13 = vector.extract_strided_slice %8 {offsets = [0, 0], sizes = [1, 8], strides = [1, 1]} : vector<8x8xf32> to vector<1x8xf32>
    %14 = vector.extract_strided_slice %9 {offsets = [0, 0], sizes = [1, 8], strides = [1, 1]} : vector<8x8xf32> to vector<1x8xf32>
    %15 = vector.broadcast %14 : vector<1x8xf32> to vector<16x8xf32>
    %16 = arith.mulf %11, %15 : vector<16x8xf32>
    %cst_13 = arith.constant dense<0.000000e+00> : vector<16xf32>
    %17 = vector.multi_reduction <add>, %16, %cst_13 [1] : vector<16x8xf32> to vector<16xf32>
    %18 = vector.shape_cast %17 : vector<16xf32> to vector<16x1xf32>
    %19 = vector.broadcast %13 : vector<1x8xf32> to vector<16x8xf32>
    %20 = arith.mulf %12, %19 : vector<16x8xf32>
    %cst_14 = arith.constant dense<0.000000e+00> : vector<16xf32>
    %21 = vector.multi_reduction <add>, %20, %cst_14 [1] : vector<16x8xf32> to vector<16xf32>
    %22 = vector.shape_cast %21 : vector<16xf32> to vector<16x1xf32>
    %cst_15 = arith.constant dense<0.000000e+00> : vector<16x16xf32>
    %23 = tpu.matmul %10, %22, %cst_15 {dimension_numbers = #tpu.dot_dimension_numbers<[1], [1], [0], [0], [0, 0, 1, 0], [], []>} : vector<16x1xf32>, vector<16x1xf32>, vector<16x16xf32> -> vector<16x16xf32>
    %24 = vector.broadcast %18 : vector<16x1xf32> to vector<16x16xf32>
    %25 = arith.addf %24, %23 : vector<16x16xf32>
    %cst_16 = arith.constant 0.000000e+00 : f32
    %26 = vector.broadcast %cst_16 : f32 to vector<16x16xf32>
    %27 = arith.cmpf ogt, %25, %26 : vector<16x16xf32>
    %cst_17 = arith.constant 2.000000e-01 : f32
    %28 = vector.broadcast %cst_17 : f32 to vector<16x16xf32>
    %29 = arith.mulf %28, %25 : vector<16x16xf32>
    %30 = arith.select %27, %25, %29 : vector<16x16xi1>, vector<16x16xf32>
    %cst_18 = arith.constant -1.000000e+30 : f32
    %31 = vector.broadcast %cst_18 : f32 to vector<16x16xf32>
    %32 = arith.select %7, %30, %31 : vector<16x16xi1>, vector<16x16xf32>
    %cst_19 = arith.constant dense<0xFF800000> : vector<16xf32>
    %33 = vector.multi_reduction <maximumf>, %32, %cst_19 [1] : vector<16x16xf32> to vector<16xf32>
    %34 = vector.shape_cast %33 : vector<16xf32> to vector<16x1xf32>
    %35 = vector.broadcast %34 : vector<16x1xf32> to vector<16x16xf32>
    %36 = arith.subf %32, %35 : vector<16x16xf32>
    %37 = math.exp %36 : vector<16x16xf32>
    %cst_20 = arith.constant dense<0.000000e+00> : vector<16xf32>
    %38 = vector.multi_reduction <add>, %37, %cst_20 [1] : vector<16x16xf32> to vector<16xf32>
    %39 = vector.shape_cast %38 : vector<16xf32> to vector<16x1xf32>
    %40 = tpu.reciprocal %39 {approx = true} : vector<16x1xf32> -> vector<16x1xf32>
    %41 = vector.broadcast %40 : vector<16x1xf32> to vector<16x16xf32>
    %42 = arith.mulf %37, %41 : vector<16x16xf32>
    %cst_21 = arith.constant dense<0.000000e+00> : vector<16x8xf32>
    %43 = tpu.matmul %42, %12, %cst_21 {dimension_numbers = #tpu.dot_dimension_numbers<[1], [0], [0], [1], [0, 0, 1, 1], [], []>} : vector<16x16xf32>, vector<16x8xf32>, vector<16x8xf32> -> vector<16x8xf32>
    %44 = vector.extract_strided_slice %3 {offsets = [0, 8], sizes = [16, 8], strides = [1, 1]} : vector<16x64xf32> to vector<16x8xf32>
    %45 = vector.extract_strided_slice %4 {offsets = [0, 8], sizes = [16, 8], strides = [1, 1]} : vector<16x64xf32> to vector<16x8xf32>
    %46 = vector.extract_strided_slice %8 {offsets = [1, 0], sizes = [1, 8], strides = [1, 1]} : vector<8x8xf32> to vector<1x8xf32>
    %47 = vector.extract_strided_slice %9 {offsets = [1, 0], sizes = [1, 8], strides = [1, 1]} : vector<8x8xf32> to vector<1x8xf32>
    %48 = vector.broadcast %47 : vector<1x8xf32> to vector<16x8xf32>
    %49 = arith.mulf %44, %48 : vector<16x8xf32>
    %cst_22 = arith.constant dense<0.000000e+00> : vector<16xf32>
    %50 = vector.multi_reduction <add>, %49, %cst_22 [1] : vector<16x8xf32> to vector<16xf32>
    %51 = vector.shape_cast %50 : vector<16xf32> to vector<16x1xf32>
    %52 = vector.broadcast %46 : vector<1x8xf32> to vector<16x8xf32>
    %53 = arith.mulf %45, %52 : vector<16x8xf32>
    %cst_23 = arith.constant dense<0.000000e+00> : vector<16xf32>
    %54 = vector.multi_reduction <add>, %53, %cst_23 [1] : vector<16x8xf32> to vector<16xf32>
    %55 = vector.shape_cast %54 : vector<16xf32> to vector<16x1xf32>
    %cst_24 = arith.constant dense<0.000000e+00> : vector<16x16xf32>
    %56 = tpu.matmul %10, %55, %cst_24 {dimension_numbers = #tpu.dot_dimension_numbers<[1], [1], [0], [0], [0, 0, 1, 0], [], []>} : vector<16x1xf32>, vector<16x1xf32>, vector<16x16xf32> -> vector<16x16xf32>
    %57 = vector.broadcast %51 : vector<16x1xf32> to vector<16x16xf32>
    %58 = arith.addf %57, %56 : vector<16x16xf32>
    %cst_25 = arith.constant 0.000000e+00 : f32
    %59 = vector.broadcast %cst_25 : f32 to vector<16x16xf32>
    %60 = arith.cmpf ogt, %58, %59 : vector<16x16xf32>
    %cst_26 = arith.constant 2.000000e-01 : f32
    %61 = vector.broadcast %cst_26 : f32 to vector<16x16xf32>
    %62 = arith.mulf %61, %58 : vector<16x16xf32>
    %63 = arith.select %60, %58, %62 : vector<16x16xi1>, vector<16x16xf32>
    %cst_27 = arith.constant -1.000000e+30 : f32
    %64 = vector.broadcast %cst_27 : f32 to vector<16x16xf32>
    %65 = arith.select %7, %63, %64 : vector<16x16xi1>, vector<16x16xf32>
    %cst_28 = arith.constant dense<0xFF800000> : vector<16xf32>
    %66 = vector.multi_reduction <maximumf>, %65, %cst_28 [1] : vector<16x16xf32> to vector<16xf32>
    %67 = vector.shape_cast %66 : vector<16xf32> to vector<16x1xf32>
    %68 = vector.broadcast %67 : vector<16x1xf32> to vector<16x16xf32>
    %69 = arith.subf %65, %68 : vector<16x16xf32>
    %70 = math.exp %69 : vector<16x16xf32>
    %cst_29 = arith.constant dense<0.000000e+00> : vector<16xf32>
    %71 = vector.multi_reduction <add>, %70, %cst_29 [1] : vector<16x16xf32> to vector<16xf32>
    %72 = vector.shape_cast %71 : vector<16xf32> to vector<16x1xf32>
    %73 = tpu.reciprocal %72 {approx = true} : vector<16x1xf32> -> vector<16x1xf32>
    %74 = vector.broadcast %73 : vector<16x1xf32> to vector<16x16xf32>
    %75 = arith.mulf %70, %74 : vector<16x16xf32>
    %cst_30 = arith.constant dense<0.000000e+00> : vector<16x8xf32>
    %76 = tpu.matmul %75, %45, %cst_30 {dimension_numbers = #tpu.dot_dimension_numbers<[1], [0], [0], [1], [0, 0, 1, 1], [], []>} : vector<16x16xf32>, vector<16x8xf32>, vector<16x8xf32> -> vector<16x8xf32>
    %77 = vector.extract_strided_slice %3 {offsets = [0, 16], sizes = [16, 8], strides = [1, 1]} : vector<16x64xf32> to vector<16x8xf32>
    %78 = vector.extract_strided_slice %4 {offsets = [0, 16], sizes = [16, 8], strides = [1, 1]} : vector<16x64xf32> to vector<16x8xf32>
    %79 = vector.extract_strided_slice %8 {offsets = [2, 0], sizes = [1, 8], strides = [1, 1]} : vector<8x8xf32> to vector<1x8xf32>
    %80 = vector.extract_strided_slice %9 {offsets = [2, 0], sizes = [1, 8], strides = [1, 1]} : vector<8x8xf32> to vector<1x8xf32>
    %81 = vector.broadcast %80 : vector<1x8xf32> to vector<16x8xf32>
    %82 = arith.mulf %77, %81 : vector<16x8xf32>
    %cst_31 = arith.constant dense<0.000000e+00> : vector<16xf32>
    %83 = vector.multi_reduction <add>, %82, %cst_31 [1] : vector<16x8xf32> to vector<16xf32>
    %84 = vector.shape_cast %83 : vector<16xf32> to vector<16x1xf32>
    %85 = vector.broadcast %79 : vector<1x8xf32> to vector<16x8xf32>
    %86 = arith.mulf %78, %85 : vector<16x8xf32>
    %cst_32 = arith.constant dense<0.000000e+00> : vector<16xf32>
    %87 = vector.multi_reduction <add>, %86, %cst_32 [1] : vector<16x8xf32> to vector<16xf32>
    %88 = vector.shape_cast %87 : vector<16xf32> to vector<16x1xf32>
    %cst_33 = arith.constant dense<0.000000e+00> : vector<16x16xf32>
    %89 = tpu.matmul %10, %88, %cst_33 {dimension_numbers = #tpu.dot_dimension_numbers<[1], [1], [0], [0], [0, 0, 1, 0], [], []>} : vector<16x1xf32>, vector<16x1xf32>, vector<16x16xf32> -> vector<16x16xf32>
    %90 = vector.broadcast %84 : vector<16x1xf32> to vector<16x16xf32>
    %91 = arith.addf %90, %89 : vector<16x16xf32>
    %cst_34 = arith.constant 0.000000e+00 : f32
    %92 = vector.broadcast %cst_34 : f32 to vector<16x16xf32>
    %93 = arith.cmpf ogt, %91, %92 : vector<16x16xf32>
    %cst_35 = arith.constant 2.000000e-01 : f32
    %94 = vector.broadcast %cst_35 : f32 to vector<16x16xf32>
    %95 = arith.mulf %94, %91 : vector<16x16xf32>
    %96 = arith.select %93, %91, %95 : vector<16x16xi1>, vector<16x16xf32>
    %cst_36 = arith.constant -1.000000e+30 : f32
    %97 = vector.broadcast %cst_36 : f32 to vector<16x16xf32>
    %98 = arith.select %7, %96, %97 : vector<16x16xi1>, vector<16x16xf32>
    %cst_37 = arith.constant dense<0xFF800000> : vector<16xf32>
    %99 = vector.multi_reduction <maximumf>, %98, %cst_37 [1] : vector<16x16xf32> to vector<16xf32>
    %100 = vector.shape_cast %99 : vector<16xf32> to vector<16x1xf32>
    %101 = vector.broadcast %100 : vector<16x1xf32> to vector<16x16xf32>
    %102 = arith.subf %98, %101 : vector<16x16xf32>
    %103 = math.exp %102 : vector<16x16xf32>
    %cst_38 = arith.constant dense<0.000000e+00> : vector<16xf32>
    %104 = vector.multi_reduction <add>, %103, %cst_38 [1] : vector<16x16xf32> to vector<16xf32>
    %105 = vector.shape_cast %104 : vector<16xf32> to vector<16x1xf32>
    %106 = tpu.reciprocal %105 {approx = true} : vector<16x1xf32> -> vector<16x1xf32>
    %107 = vector.broadcast %106 : vector<16x1xf32> to vector<16x16xf32>
    %108 = arith.mulf %103, %107 : vector<16x16xf32>
    %cst_39 = arith.constant dense<0.000000e+00> : vector<16x8xf32>
    %109 = tpu.matmul %108, %78, %cst_39 {dimension_numbers = #tpu.dot_dimension_numbers<[1], [0], [0], [1], [0, 0, 1, 1], [], []>} : vector<16x16xf32>, vector<16x8xf32>, vector<16x8xf32> -> vector<16x8xf32>
    %110 = vector.extract_strided_slice %3 {offsets = [0, 24], sizes = [16, 8], strides = [1, 1]} : vector<16x64xf32> to vector<16x8xf32>
    %111 = vector.extract_strided_slice %4 {offsets = [0, 24], sizes = [16, 8], strides = [1, 1]} : vector<16x64xf32> to vector<16x8xf32>
    %112 = vector.extract_strided_slice %8 {offsets = [3, 0], sizes = [1, 8], strides = [1, 1]} : vector<8x8xf32> to vector<1x8xf32>
    %113 = vector.extract_strided_slice %9 {offsets = [3, 0], sizes = [1, 8], strides = [1, 1]} : vector<8x8xf32> to vector<1x8xf32>
    %114 = vector.broadcast %113 : vector<1x8xf32> to vector<16x8xf32>
    %115 = arith.mulf %110, %114 : vector<16x8xf32>
    %cst_40 = arith.constant dense<0.000000e+00> : vector<16xf32>
    %116 = vector.multi_reduction <add>, %115, %cst_40 [1] : vector<16x8xf32> to vector<16xf32>
    %117 = vector.shape_cast %116 : vector<16xf32> to vector<16x1xf32>
    %118 = vector.broadcast %112 : vector<1x8xf32> to vector<16x8xf32>
    %119 = arith.mulf %111, %118 : vector<16x8xf32>
    %cst_41 = arith.constant dense<0.000000e+00> : vector<16xf32>
    %120 = vector.multi_reduction <add>, %119, %cst_41 [1] : vector<16x8xf32> to vector<16xf32>
    %121 = vector.shape_cast %120 : vector<16xf32> to vector<16x1xf32>
    %cst_42 = arith.constant dense<0.000000e+00> : vector<16x16xf32>
    %122 = tpu.matmul %10, %121, %cst_42 {dimension_numbers = #tpu.dot_dimension_numbers<[1], [1], [0], [0], [0, 0, 1, 0], [], []>} : vector<16x1xf32>, vector<16x1xf32>, vector<16x16xf32> -> vector<16x16xf32>
    %123 = vector.broadcast %117 : vector<16x1xf32> to vector<16x16xf32>
    %124 = arith.addf %123, %122 : vector<16x16xf32>
    %cst_43 = arith.constant 0.000000e+00 : f32
    %125 = vector.broadcast %cst_43 : f32 to vector<16x16xf32>
    %126 = arith.cmpf ogt, %124, %125 : vector<16x16xf32>
    %cst_44 = arith.constant 2.000000e-01 : f32
    %127 = vector.broadcast %cst_44 : f32 to vector<16x16xf32>
    %128 = arith.mulf %127, %124 : vector<16x16xf32>
    %129 = arith.select %126, %124, %128 : vector<16x16xi1>, vector<16x16xf32>
    %cst_45 = arith.constant -1.000000e+30 : f32
    %130 = vector.broadcast %cst_45 : f32 to vector<16x16xf32>
    %131 = arith.select %7, %129, %130 : vector<16x16xi1>, vector<16x16xf32>
    %cst_46 = arith.constant dense<0xFF800000> : vector<16xf32>
    %132 = vector.multi_reduction <maximumf>, %131, %cst_46 [1] : vector<16x16xf32> to vector<16xf32>
    %133 = vector.shape_cast %132 : vector<16xf32> to vector<16x1xf32>
    %134 = vector.broadcast %133 : vector<16x1xf32> to vector<16x16xf32>
    %135 = arith.subf %131, %134 : vector<16x16xf32>
    %136 = math.exp %135 : vector<16x16xf32>
    %cst_47 = arith.constant dense<0.000000e+00> : vector<16xf32>
    %137 = vector.multi_reduction <add>, %136, %cst_47 [1] : vector<16x16xf32> to vector<16xf32>
    %138 = vector.shape_cast %137 : vector<16xf32> to vector<16x1xf32>
    %139 = tpu.reciprocal %138 {approx = true} : vector<16x1xf32> -> vector<16x1xf32>
    %140 = vector.broadcast %139 : vector<16x1xf32> to vector<16x16xf32>
    %141 = arith.mulf %136, %140 : vector<16x16xf32>
    %cst_48 = arith.constant dense<0.000000e+00> : vector<16x8xf32>
    %142 = tpu.matmul %141, %111, %cst_48 {dimension_numbers = #tpu.dot_dimension_numbers<[1], [0], [0], [1], [0, 0, 1, 1], [], []>} : vector<16x16xf32>, vector<16x8xf32>, vector<16x8xf32> -> vector<16x8xf32>
    %143 = vector.extract_strided_slice %3 {offsets = [0, 32], sizes = [16, 8], strides = [1, 1]} : vector<16x64xf32> to vector<16x8xf32>
    %144 = vector.extract_strided_slice %4 {offsets = [0, 32], sizes = [16, 8], strides = [1, 1]} : vector<16x64xf32> to vector<16x8xf32>
    %145 = vector.extract_strided_slice %8 {offsets = [4, 0], sizes = [1, 8], strides = [1, 1]} : vector<8x8xf32> to vector<1x8xf32>
    %146 = vector.extract_strided_slice %9 {offsets = [4, 0], sizes = [1, 8], strides = [1, 1]} : vector<8x8xf32> to vector<1x8xf32>
    %147 = vector.broadcast %146 : vector<1x8xf32> to vector<16x8xf32>
    %148 = arith.mulf %143, %147 : vector<16x8xf32>
    %cst_49 = arith.constant dense<0.000000e+00> : vector<16xf32>
    %149 = vector.multi_reduction <add>, %148, %cst_49 [1] : vector<16x8xf32> to vector<16xf32>
    %150 = vector.shape_cast %149 : vector<16xf32> to vector<16x1xf32>
    %151 = vector.broadcast %145 : vector<1x8xf32> to vector<16x8xf32>
    %152 = arith.mulf %144, %151 : vector<16x8xf32>
    %cst_50 = arith.constant dense<0.000000e+00> : vector<16xf32>
    %153 = vector.multi_reduction <add>, %152, %cst_50 [1] : vector<16x8xf32> to vector<16xf32>
    %154 = vector.shape_cast %153 : vector<16xf32> to vector<16x1xf32>
    %cst_51 = arith.constant dense<0.000000e+00> : vector<16x16xf32>
    %155 = tpu.matmul %10, %154, %cst_51 {dimension_numbers = #tpu.dot_dimension_numbers<[1], [1], [0], [0], [0, 0, 1, 0], [], []>} : vector<16x1xf32>, vector<16x1xf32>, vector<16x16xf32> -> vector<16x16xf32>
    %156 = vector.broadcast %150 : vector<16x1xf32> to vector<16x16xf32>
    %157 = arith.addf %156, %155 : vector<16x16xf32>
    %cst_52 = arith.constant 0.000000e+00 : f32
    %158 = vector.broadcast %cst_52 : f32 to vector<16x16xf32>
    %159 = arith.cmpf ogt, %157, %158 : vector<16x16xf32>
    %cst_53 = arith.constant 2.000000e-01 : f32
    %160 = vector.broadcast %cst_53 : f32 to vector<16x16xf32>
    %161 = arith.mulf %160, %157 : vector<16x16xf32>
    %162 = arith.select %159, %157, %161 : vector<16x16xi1>, vector<16x16xf32>
    %cst_54 = arith.constant -1.000000e+30 : f32
    %163 = vector.broadcast %cst_54 : f32 to vector<16x16xf32>
    %164 = arith.select %7, %162, %163 : vector<16x16xi1>, vector<16x16xf32>
    %cst_55 = arith.constant dense<0xFF800000> : vector<16xf32>
    %165 = vector.multi_reduction <maximumf>, %164, %cst_55 [1] : vector<16x16xf32> to vector<16xf32>
    %166 = vector.shape_cast %165 : vector<16xf32> to vector<16x1xf32>
    %167 = vector.broadcast %166 : vector<16x1xf32> to vector<16x16xf32>
    %168 = arith.subf %164, %167 : vector<16x16xf32>
    %169 = math.exp %168 : vector<16x16xf32>
    %cst_56 = arith.constant dense<0.000000e+00> : vector<16xf32>
    %170 = vector.multi_reduction <add>, %169, %cst_56 [1] : vector<16x16xf32> to vector<16xf32>
    %171 = vector.shape_cast %170 : vector<16xf32> to vector<16x1xf32>
    %172 = tpu.reciprocal %171 {approx = true} : vector<16x1xf32> -> vector<16x1xf32>
    %173 = vector.broadcast %172 : vector<16x1xf32> to vector<16x16xf32>
    %174 = arith.mulf %169, %173 : vector<16x16xf32>
    %cst_57 = arith.constant dense<0.000000e+00> : vector<16x8xf32>
    %175 = tpu.matmul %174, %144, %cst_57 {dimension_numbers = #tpu.dot_dimension_numbers<[1], [0], [0], [1], [0, 0, 1, 1], [], []>} : vector<16x16xf32>, vector<16x8xf32>, vector<16x8xf32> -> vector<16x8xf32>
    %176 = vector.extract_strided_slice %3 {offsets = [0, 40], sizes = [16, 8], strides = [1, 1]} : vector<16x64xf32> to vector<16x8xf32>
    %177 = vector.extract_strided_slice %4 {offsets = [0, 40], sizes = [16, 8], strides = [1, 1]} : vector<16x64xf32> to vector<16x8xf32>
    %178 = vector.extract_strided_slice %8 {offsets = [5, 0], sizes = [1, 8], strides = [1, 1]} : vector<8x8xf32> to vector<1x8xf32>
    %179 = vector.extract_strided_slice %9 {offsets = [5, 0], sizes = [1, 8], strides = [1, 1]} : vector<8x8xf32> to vector<1x8xf32>
    %180 = vector.broadcast %179 : vector<1x8xf32> to vector<16x8xf32>
    %181 = arith.mulf %176, %180 : vector<16x8xf32>
    %cst_58 = arith.constant dense<0.000000e+00> : vector<16xf32>
    %182 = vector.multi_reduction <add>, %181, %cst_58 [1] : vector<16x8xf32> to vector<16xf32>
    %183 = vector.shape_cast %182 : vector<16xf32> to vector<16x1xf32>
    %184 = vector.broadcast %178 : vector<1x8xf32> to vector<16x8xf32>
    %185 = arith.mulf %177, %184 : vector<16x8xf32>
    %cst_59 = arith.constant dense<0.000000e+00> : vector<16xf32>
    %186 = vector.multi_reduction <add>, %185, %cst_59 [1] : vector<16x8xf32> to vector<16xf32>
    %187 = vector.shape_cast %186 : vector<16xf32> to vector<16x1xf32>
    %cst_60 = arith.constant dense<0.000000e+00> : vector<16x16xf32>
    %188 = tpu.matmul %10, %187, %cst_60 {dimension_numbers = #tpu.dot_dimension_numbers<[1], [1], [0], [0], [0, 0, 1, 0], [], []>} : vector<16x1xf32>, vector<16x1xf32>, vector<16x16xf32> -> vector<16x16xf32>
    %189 = vector.broadcast %183 : vector<16x1xf32> to vector<16x16xf32>
    %190 = arith.addf %189, %188 : vector<16x16xf32>
    %cst_61 = arith.constant 0.000000e+00 : f32
    %191 = vector.broadcast %cst_61 : f32 to vector<16x16xf32>
    %192 = arith.cmpf ogt, %190, %191 : vector<16x16xf32>
    %cst_62 = arith.constant 2.000000e-01 : f32
    %193 = vector.broadcast %cst_62 : f32 to vector<16x16xf32>
    %194 = arith.mulf %193, %190 : vector<16x16xf32>
    %195 = arith.select %192, %190, %194 : vector<16x16xi1>, vector<16x16xf32>
    %cst_63 = arith.constant -1.000000e+30 : f32
    %196 = vector.broadcast %cst_63 : f32 to vector<16x16xf32>
    %197 = arith.select %7, %195, %196 : vector<16x16xi1>, vector<16x16xf32>
    %cst_64 = arith.constant dense<0xFF800000> : vector<16xf32>
    %198 = vector.multi_reduction <maximumf>, %197, %cst_64 [1] : vector<16x16xf32> to vector<16xf32>
    %199 = vector.shape_cast %198 : vector<16xf32> to vector<16x1xf32>
    %200 = vector.broadcast %199 : vector<16x1xf32> to vector<16x16xf32>
    %201 = arith.subf %197, %200 : vector<16x16xf32>
    %202 = math.exp %201 : vector<16x16xf32>
    %cst_65 = arith.constant dense<0.000000e+00> : vector<16xf32>
    %203 = vector.multi_reduction <add>, %202, %cst_65 [1] : vector<16x16xf32> to vector<16xf32>
    %204 = vector.shape_cast %203 : vector<16xf32> to vector<16x1xf32>
    %205 = tpu.reciprocal %204 {approx = true} : vector<16x1xf32> -> vector<16x1xf32>
    %206 = vector.broadcast %205 : vector<16x1xf32> to vector<16x16xf32>
    %207 = arith.mulf %202, %206 : vector<16x16xf32>
    %cst_66 = arith.constant dense<0.000000e+00> : vector<16x8xf32>
    %208 = tpu.matmul %207, %177, %cst_66 {dimension_numbers = #tpu.dot_dimension_numbers<[1], [0], [0], [1], [0, 0, 1, 1], [], []>} : vector<16x16xf32>, vector<16x8xf32>, vector<16x8xf32> -> vector<16x8xf32>
    %209 = vector.extract_strided_slice %3 {offsets = [0, 48], sizes = [16, 8], strides = [1, 1]} : vector<16x64xf32> to vector<16x8xf32>
    %210 = vector.extract_strided_slice %4 {offsets = [0, 48], sizes = [16, 8], strides = [1, 1]} : vector<16x64xf32> to vector<16x8xf32>
    %211 = vector.extract_strided_slice %8 {offsets = [6, 0], sizes = [1, 8], strides = [1, 1]} : vector<8x8xf32> to vector<1x8xf32>
    %212 = vector.extract_strided_slice %9 {offsets = [6, 0], sizes = [1, 8], strides = [1, 1]} : vector<8x8xf32> to vector<1x8xf32>
    %213 = vector.broadcast %212 : vector<1x8xf32> to vector<16x8xf32>
    %214 = arith.mulf %209, %213 : vector<16x8xf32>
    %cst_67 = arith.constant dense<0.000000e+00> : vector<16xf32>
    %215 = vector.multi_reduction <add>, %214, %cst_67 [1] : vector<16x8xf32> to vector<16xf32>
    %216 = vector.shape_cast %215 : vector<16xf32> to vector<16x1xf32>
    %217 = vector.broadcast %211 : vector<1x8xf32> to vector<16x8xf32>
    %218 = arith.mulf %210, %217 : vector<16x8xf32>
    %cst_68 = arith.constant dense<0.000000e+00> : vector<16xf32>
    %219 = vector.multi_reduction <add>, %218, %cst_68 [1] : vector<16x8xf32> to vector<16xf32>
    %220 = vector.shape_cast %219 : vector<16xf32> to vector<16x1xf32>
    %cst_69 = arith.constant dense<0.000000e+00> : vector<16x16xf32>
    %221 = tpu.matmul %10, %220, %cst_69 {dimension_numbers = #tpu.dot_dimension_numbers<[1], [1], [0], [0], [0, 0, 1, 0], [], []>} : vector<16x1xf32>, vector<16x1xf32>, vector<16x16xf32> -> vector<16x16xf32>
    %222 = vector.broadcast %216 : vector<16x1xf32> to vector<16x16xf32>
    %223 = arith.addf %222, %221 : vector<16x16xf32>
    %cst_70 = arith.constant 0.000000e+00 : f32
    %224 = vector.broadcast %cst_70 : f32 to vector<16x16xf32>
    %225 = arith.cmpf ogt, %223, %224 : vector<16x16xf32>
    %cst_71 = arith.constant 2.000000e-01 : f32
    %226 = vector.broadcast %cst_71 : f32 to vector<16x16xf32>
    %227 = arith.mulf %226, %223 : vector<16x16xf32>
    %228 = arith.select %225, %223, %227 : vector<16x16xi1>, vector<16x16xf32>
    %cst_72 = arith.constant -1.000000e+30 : f32
    %229 = vector.broadcast %cst_72 : f32 to vector<16x16xf32>
    %230 = arith.select %7, %228, %229 : vector<16x16xi1>, vector<16x16xf32>
    %cst_73 = arith.constant dense<0xFF800000> : vector<16xf32>
    %231 = vector.multi_reduction <maximumf>, %230, %cst_73 [1] : vector<16x16xf32> to vector<16xf32>
    %232 = vector.shape_cast %231 : vector<16xf32> to vector<16x1xf32>
    %233 = vector.broadcast %232 : vector<16x1xf32> to vector<16x16xf32>
    %234 = arith.subf %230, %233 : vector<16x16xf32>
    %235 = math.exp %234 : vector<16x16xf32>
    %cst_74 = arith.constant dense<0.000000e+00> : vector<16xf32>
    %236 = vector.multi_reduction <add>, %235, %cst_74 [1] : vector<16x16xf32> to vector<16xf32>
    %237 = vector.shape_cast %236 : vector<16xf32> to vector<16x1xf32>
    %238 = tpu.reciprocal %237 {approx = true} : vector<16x1xf32> -> vector<16x1xf32>
    %239 = vector.broadcast %238 : vector<16x1xf32> to vector<16x16xf32>
    %240 = arith.mulf %235, %239 : vector<16x16xf32>
    %cst_75 = arith.constant dense<0.000000e+00> : vector<16x8xf32>
    %241 = tpu.matmul %240, %210, %cst_75 {dimension_numbers = #tpu.dot_dimension_numbers<[1], [0], [0], [1], [0, 0, 1, 1], [], []>} : vector<16x16xf32>, vector<16x8xf32>, vector<16x8xf32> -> vector<16x8xf32>
    %242 = vector.extract_strided_slice %3 {offsets = [0, 56], sizes = [16, 8], strides = [1, 1]} : vector<16x64xf32> to vector<16x8xf32>
    %243 = vector.extract_strided_slice %4 {offsets = [0, 56], sizes = [16, 8], strides = [1, 1]} : vector<16x64xf32> to vector<16x8xf32>
    %244 = vector.extract_strided_slice %8 {offsets = [7, 0], sizes = [1, 8], strides = [1, 1]} : vector<8x8xf32> to vector<1x8xf32>
    %245 = vector.extract_strided_slice %9 {offsets = [7, 0], sizes = [1, 8], strides = [1, 1]} : vector<8x8xf32> to vector<1x8xf32>
    %246 = vector.broadcast %245 : vector<1x8xf32> to vector<16x8xf32>
    %247 = arith.mulf %242, %246 : vector<16x8xf32>
    %cst_76 = arith.constant dense<0.000000e+00> : vector<16xf32>
    %248 = vector.multi_reduction <add>, %247, %cst_76 [1] : vector<16x8xf32> to vector<16xf32>
    %249 = vector.shape_cast %248 : vector<16xf32> to vector<16x1xf32>
    %250 = vector.broadcast %244 : vector<1x8xf32> to vector<16x8xf32>
    %251 = arith.mulf %243, %250 : vector<16x8xf32>
    %cst_77 = arith.constant dense<0.000000e+00> : vector<16xf32>
    %252 = vector.multi_reduction <add>, %251, %cst_77 [1] : vector<16x8xf32> to vector<16xf32>
    %253 = vector.shape_cast %252 : vector<16xf32> to vector<16x1xf32>
    %cst_78 = arith.constant dense<0.000000e+00> : vector<16x16xf32>
    %254 = tpu.matmul %10, %253, %cst_78 {dimension_numbers = #tpu.dot_dimension_numbers<[1], [1], [0], [0], [0, 0, 1, 0], [], []>} : vector<16x1xf32>, vector<16x1xf32>, vector<16x16xf32> -> vector<16x16xf32>
    %255 = vector.broadcast %249 : vector<16x1xf32> to vector<16x16xf32>
    %256 = arith.addf %255, %254 : vector<16x16xf32>
    %cst_79 = arith.constant 0.000000e+00 : f32
    %257 = vector.broadcast %cst_79 : f32 to vector<16x16xf32>
    %258 = arith.cmpf ogt, %256, %257 : vector<16x16xf32>
    %cst_80 = arith.constant 2.000000e-01 : f32
    %259 = vector.broadcast %cst_80 : f32 to vector<16x16xf32>
    %260 = arith.mulf %259, %256 : vector<16x16xf32>
    %261 = arith.select %258, %256, %260 : vector<16x16xi1>, vector<16x16xf32>
    %cst_81 = arith.constant -1.000000e+30 : f32
    %262 = vector.broadcast %cst_81 : f32 to vector<16x16xf32>
    %263 = arith.select %7, %261, %262 : vector<16x16xi1>, vector<16x16xf32>
    %cst_82 = arith.constant dense<0xFF800000> : vector<16xf32>
    %264 = vector.multi_reduction <maximumf>, %263, %cst_82 [1] : vector<16x16xf32> to vector<16xf32>
    %265 = vector.shape_cast %264 : vector<16xf32> to vector<16x1xf32>
    %266 = vector.broadcast %265 : vector<16x1xf32> to vector<16x16xf32>
    %267 = arith.subf %263, %266 : vector<16x16xf32>
    %268 = math.exp %267 : vector<16x16xf32>
    %cst_83 = arith.constant dense<0.000000e+00> : vector<16xf32>
    %269 = vector.multi_reduction <add>, %268, %cst_83 [1] : vector<16x16xf32> to vector<16xf32>
    %270 = vector.shape_cast %269 : vector<16xf32> to vector<16x1xf32>
    %271 = tpu.reciprocal %270 {approx = true} : vector<16x1xf32> -> vector<16x1xf32>
    %272 = vector.broadcast %271 : vector<16x1xf32> to vector<16x16xf32>
    %273 = arith.mulf %268, %272 : vector<16x16xf32>
    %cst_84 = arith.constant dense<0.000000e+00> : vector<16x8xf32>
    %274 = tpu.matmul %273, %243, %cst_84 {dimension_numbers = #tpu.dot_dimension_numbers<[1], [0], [0], [1], [0, 0, 1, 1], [], []>} : vector<16x16xf32>, vector<16x8xf32>, vector<16x8xf32> -> vector<16x8xf32>
    %275 = tpu.concatenate %43, %76, %109, %142, %175, %208, %241, %274 in 1 : vector<16x8xf32>, vector<16x8xf32>, vector<16x8xf32>, vector<16x8xf32>, vector<16x8xf32>, vector<16x8xf32>, vector<16x8xf32>, vector<16x8xf32> -> vector<16x64xf32>
    %c0_85 = arith.constant 0 : index
    %c0_86 = arith.constant 0 : index
    %276 = vector.load %arg7[%c0_85, %c0_86] : memref<16x64xf32, #tpu.memory_space<vmem>>, vector<16x64xf32>
    tpu.vector_store %arg7[%c0_85, %c0_86], %275 {strides = array<i32>} : memref<16x64xf32, #tpu.memory_space<vmem>>, vector<16x64xf32>,
    return
  }
  func.func @transform_0(%arg0: i32) -> (i32, i32) {
    %c0_i32 = arith.constant 0 : i32
    %c0_i32_0 = arith.constant 0 : i32
    return %arg0, %c0_i32 : i32, i32
  }
  func.func @transform_1(%arg0: i32) -> (i32, i32) {
    %c0_i32 = arith.constant 0 : i32
    %c0_i32_0 = arith.constant 0 : i32
    %c0_i32_1 = arith.constant 0 : i32
    return %c0_i32, %c0_i32_0 : i32, i32
  }
  func.func @transform_2(%arg0: i32) -> (i32, i32) {
    %c0_i32 = arith.constant 0 : i32
    %c0_i32_0 = arith.constant 0 : i32
    %c0_i32_1 = arith.constant 0 : i32
    return %c0_i32, %c0_i32_0 : i32, i32
  }
  func.func @transform_3(%arg0: i32) -> (i32, i32) {
    %c0_i32 = arith.constant 0 : i32
    %c0_i32_0 = arith.constant 0 : i32
    %c0_i32_1 = arith.constant 0 : i32
    return %c0_i32, %c0_i32_0 : i32, i32
  }
  func.func @transform_4(%arg0: i32) -> (i32, i32) {
    %c0_i32 = arith.constant 0 : i32
    %c0_i32_0 = arith.constant 0 : i32
    %c0_i32_1 = arith.constant 0 : i32
    return %c0_i32, %c0_i32_0 : i32, i32
  }
  func.func @transform_5(%arg0: i32) -> (i32, i32) {
    %c0_i32 = arith.constant 0 : i32
    %c0_i32_0 = arith.constant 0 : i32
    return %arg0, %c0_i32 : i32, i32
  }
  func.func @transform_6(%arg0: i32) -> (i32, i32) {
    %c0_i32 = arith.constant 0 : i32
    %c0_i32_0 = arith.constant 0 : i32
    return %arg0, %c0_i32 : i32, i32
  }
}

</mosaic_0001>

<llo_original>
// kernel: tpu_custom_call.1
$region0: #{tpu_custom_call.1}
  #allocation0 [shape = 'u32[]', space=smem, size = 0x4, offset = 0x4, fixed_abs, tag = 'smem constant byte address 0x4 - core index']
  #allocation1 [shape = 'u32[72,128]{1,0:T(1,128)}', space=vmem, size = 0x9000, scoped, tag = 'internal scratch']
  %s0 = inlined_call_operand.vmem [shape: f32[16,8], index: 0, kind: input, shape index: {}]
  %s1 = inlined_call_operand.vmem [shape: f32[16,8], index: 1, kind: input, shape index: {}]
  %s2 = inlined_call_operand.vmem [shape: f32[8,64], index: 2, kind: input, shape index: {}]
  %s3 = inlined_call_operand.vmem [shape: f32[8,8], index: 3, kind: input, shape index: {}]
  %s4 = inlined_call_operand.vmem [shape: f32[8,8], index: 4, kind: input, shape index: {}]
  %s5 = inlined_call_operand.vmem [shape: s8[16,16], index: 5, kind: input, shape index: {}]
  %s6 = inlined_call_operand.hbm [shape: f32[16,64], index: 6, kind: output, shape index: {}]
  %s7 = sld [smem:[#allocation0]]
  $region34: #{tpu_custom_call.1} parent=0
    _
  %s9 = ssub.s32 1, %s7
  %s10 = scalar_select 0, %s9, %s7
  $region1: #{tpu_custom_call.1} parent=0
    #allocation2 [shape = 'u8[8192]{0}', space=vmem, size = 0x2000, scoped, tag = 'output window, operand 0, single buffered']
    #allocation3 [shape = 's32[1]{0}', space=sflag, size = 0x4, scoped, tag = 'scoped memory for tpu_custom_call.1']
    %11 = vsyncpa [#allocation3], 0
    // Predicated region
    $region2: #{tpu_custom_call.1} parent=1 // pred_check
      _
    $region3: #{tpu_custom_call.1} parent=1 // pred_check_branch
      %13 = sbr.rel (0) target = $region5
    $region4: #{tpu_custom_call.1} parent=1 // pred_region
      _
    $region5: #{tpu_custom_call.1} parent=1 // pred_fallthru
      _
    // Predicated region
    $region6: #{tpu_custom_call.1} parent=1 // pred_check
      _
    $region7: #{tpu_custom_call.1} parent=1 // pred_check_branch
      %15 = sbr.rel (0) target = $region9
    $region8: #{tpu_custom_call.1} parent=1 // pred_region
      _
    $region9: #{tpu_custom_call.1} parent=1 // pred_fallthru
      _
    // Predicated region
    $region10: #{tpu_custom_call.1} parent=1 // pred_check
      _
    $region11: #{tpu_custom_call.1} parent=1 // pred_check_branch
      %17 = sbr.rel (0) target = $region13
    $region12: #{tpu_custom_call.1} parent=1 // pred_region
      _
    $region13: #{tpu_custom_call.1} parent=1 // pred_fallthru
      _
    // Predicated region
    $region14: #{tpu_custom_call.1} parent=1 // pred_check
      _
    $region15: #{tpu_custom_call.1} parent=1 // pred_check_branch
      %19 = sbr.rel (0) target = $region17
    $region16: #{tpu_custom_call.1} parent=1 // pred_region
      _
    $region17: #{tpu_custom_call.1} parent=1 // pred_fallthru
      _
    // Predicated region
    $region18: #{tpu_custom_call.1} parent=1 // pred_check
      _
    $region19: #{tpu_custom_call.1} parent=1 // pred_check_branch
      %21 = sbr.rel (0) target = $region21
    $region20: #{tpu_custom_call.1} parent=1 // pred_region
      _
    $region21: #{tpu_custom_call.1} parent=1 // pred_fallthru
      _
    // Predicated region
    $region22: #{tpu_custom_call.1} parent=1 // pred_check
      _
    $region23: #{tpu_custom_call.1} parent=1 // pred_check_branch
      %23 = sbr.rel (0) target = $region25
    $region24: #{tpu_custom_call.1} parent=1 // pred_region
      _
    $region25: #{tpu_custom_call.1} parent=1 // pred_fallthru
      _
    %v26 = vld [vmem:[%s0] sm:$0xff]
    %v27 = vld [vmem:[%s0 + $0x8] sm:$0xff]
    %v28 = vld [vmem:[%s1] sm:$0xff]
    %v29 = vld [vmem:[%s1 + $0x8] sm:$0xff]
    %v30 = vld [vmem:[%s2] sm:$0xff]
    %vm31 = vcmask 64512
    %v33 = vsel %vm31, %v26, 0
    %v36 = vsel %vm31, %v27, 0
    %38 = vmatpush.msra.mxu0 0.0
    %39 = vmatpush.msra.mxu0 0.0
    %40 = vmatpush.msra.mxu0 0.0
    %41 = vmatpush.msra.mxu0 0.0
    %42 = vmatpush.msra.mxu0 0.0
    %43 = vmatpush.msra.mxu0 0.0
    %44 = vmatpush.msra.mxu0 0.0
    %45 = vmatpush.msra.mxu0 0.0
    %46 = vmatpush.msra.mxu0 0.0
    %47 = vmatpush.msra.mxu0 0.0
    %48 = vmatpush.msra.mxu0 0.0
    %49 = vmatpush.msra.mxu0 0.0
    %50 = vmatpush.msra.mxu0 0.0
    %51 = vmatpush.msra.mxu0 0.0
    %52 = vmatpush.msra.mxu0 0.0
    %53 = vmatpush.msra.mxu0 %v30
    %54 = vmatmul.f32.gmra.mxu0 %v33
    %v55 = vpop.f32.mrf.mxu0
    %v56 = vadd.f32 0.0, %v55
    %57 = vmatmul.f32.gmra.mxu0 %v36
    %v58 = vpop.f32.mrf.mxu0
    %v59 = vadd.f32 0.0, %v58
    %60 = vdwg.mxu0
    %v62 = vsel %vm31, %v28, 0
    %v65 = vsel %vm31, %v29, 0
    %67 = vmatpush.msra.mxu0 0.0
    %68 = vmatpush.msra.mxu0 0.0
    %69 = vmatpush.msra.mxu0 0.0
    %70 = vmatpush.msra.mxu0 0.0
    %71 = vmatpush.msra.mxu0 0.0
    %72 = vmatpush.msra.mxu0 0.0
    %73 = vmatpush.msra.mxu0 0.0
    %74 = vmatpush.msra.mxu0 0.0
    %75 = vmatpush.msra.mxu0 0.0
    %76 = vmatpush.msra.mxu0 0.0
    %77 = vmatpush.msra.mxu0 0.0
    %78 = vmatpush.msra.mxu0 0.0
    %79 = vmatpush.msra.mxu0 0.0
    %80 = vmatpush.msra.mxu0 0.0
    %81 = vmatpush.msra.mxu0 0.0
    %82 = vmatpush.msra.mxu0 %v30
    %83 = vmatmul.f32.gmra.mxu0 %v62
    %v84 = vpop.f32.mrf.mxu0
    %v85 = vadd.f32 0.0, %v84
    %86 = vmatmul.f32.gmra.mxu0 %v65
    %v87 = vpop.f32.mrf.mxu0
    %v88 = vadd.f32 0.0, %v87
    %89 = vdwg.mxu0
    %v90 = vld [vmem:[%s5] sm:$0x3]
    %v91 = vld [vmem:[%s5 + $0x2] sm:$0x3]
    %vm92 = vnez %v90
    %vm93 = vnez %v91
    %v94 = vld [vmem:[%s3] sm:$0xff]
    %v95 = vld [vmem:[%s4] sm:$0xff]
    %v96 = vperm.slane %v95, 0
    %v97 = vmul.f32 %v56, %v96
    %v98 = vmul.f32 %v59, %v96
    %v99 = vsel %vm31, %v97, 0.0
    %100 = vadd.xlane.f32.xlu0 %v99
    %v101 = vpop.xlane.xlu0 %100
    %v102 = vsel %vm31, %v98, 0.0
    %103 = vadd.xlane.f32.xlu0 %v102
    %v104 = vpop.xlane.xlu0 %103
    %v105 = vperm.slane %v94, 0
    %v106 = vmul.f32 %v85, %v105
    %v107 = vmul.f32 %v88, %v105
    %v108 = vsel %vm31, %v106, 0.0
    %109 = vadd.xlane.f32.xlu0 %v108
    %v110 = vpop.xlane.xlu0 %109
    %v111 = vsel %vm31, %v107, 0.0
    %112 = vadd.xlane.f32.xlu0 %v111
    %v113 = vpop.xlane.xlu0 %112
    %vm114 = vcmask 7168
    %v116 = vsel %vm114, 1.0, 0
    %v119 = vsel %vm114, %v110, 0
    %v122 = vsel %vm114, %v113, 0
    %124 = vmatpush.xpose.msra.mxu0 0.0
    %125 = vmatpush.xpose.msra.mxu0 0.0
    %126 = vmatpush.xpose.msra.mxu0 0.0
    %127 = vmatpush.xpose.msra.mxu0 0.0
    %128 = vmatpush.xpose.msra.mxu0 0.0
    %129 = vmatpush.xpose.msra.mxu0 0.0
    %130 = vmatpush.xpose.msra.mxu0 0.0
    %131 = vmatpush.xpose.msra.mxu0 0.0
    %132 = vmatpush.xpose.msra.mxu0 0.0
    %133 = vmatpush.xpose.msra.mxu0 0.0
    %134 = vmatpush.xpose.msra.mxu0 0.0
    %135 = vmatpush.xpose.msra.mxu0 0.0
    %136 = vmatpush.xpose.msra.mxu0 0.0
    %137 = vmatpush.xpose.msra.mxu0 0.0
    %138 = vmatpush.xpose.msra.mxu0 %v122
    %139 = vmatpush.xpose.msra.mxu0 %v119
    %140 = vmatmul.f32.gmra.mxu0 %v116
    %v141 = vpop.f32.mrf.mxu0
    %v142 = vadd.f32 0.0, %v141
    %143 = vmatmul.f32.gmra.mxu0 %v116
    %v144 = vpop.f32.mrf.mxu0
    %v145 = vadd.f32 0.0, %v144
    %146 = vdwg.mxu0
    %v147 = vadd.f32 %v101, %v142
    %v148 = vadd.f32 %v104, %v145
    %vm149 = vcmp.gt.f32.partialorder %v147, 0.0
    %vm150 = vcmp.gt.f32.partialorder %v148, 0.0
    %v151 = vmul.f32 %v147, 0.2
    %v152 = vmul.f32 %v148, 0.2
    %v153 = vsel %vm149, %v147, %v151
    %v154 = vsel %vm150, %v148, %v152
    %v155 = vsel %vm92, 16843009, 0
    %v156 = vsel %vm93, 16843009, 0
    %v157 = vunpack.c.0.s8 %v155
    %v158 = vunpack.c.0.s8 %v156
    %vm159 = vcmp.ne.s32.totalorder %v157, 0
    %vm160 = vcmp.ne.s32.totalorder %v158, 0
    %v161 = vsel %vm159, %v153, -1e+30
    %v162 = vsel %vm160, %v154, -1e+30
    %vm163 = vcmask 130048
    %v164 = vsel %vm163, %v161, -inf
    %165 = vmax.xlane.f32.xlu0 %v164
    %v166 = vpop.xlane.xlu0 %165
    %v167 = vsel %vm163, %v162, -inf
    %168 = vmax.xlane.f32.xlu0 %v167
    %v169 = vpop.xlane.xlu0 %168
    %v170 = vsub.f32 %v161, %v166
    %v171 = vsub.f32 %v162, %v169
    %v172 = vmul.f32 %v170, 1.442695
    %v173 = vpow.pop %v172
    %v174 = vmul.f32 %v171, 1.442695
    %v175 = vpow.pop %v174
    %v176 = vsel %vm163, %v173, 0.0
    %177 = vadd.xlane.f32.xlu0 %v176
    %v178 = vpop.xlane.xlu0 %177
    %v179 = vsel %vm163, %v175, 0.0
    %180 = vadd.xlane.f32.xlu0 %v179
    %v181 = vpop.xlane.xlu0 %180
    %v182 = vrcp.pop %v178
    %v183 = vrcp.pop %v181
    %v184 = vmul.f32 %v173, %v182
    %v185 = vmul.f32 %v175, %v183
    %v187 = vsel %vm163, %v184, 0
    %v190 = vsel %vm163, %v185, 0
    %192 = vmatpush.msra.mxu0 0.0
    %193 = vmatpush.msra.mxu0 0.0
    %194 = vmatpush.msra.mxu0 0.0
    %195 = vmatpush.msra.mxu0 0.0
    %196 = vmatpush.msra.mxu0 0.0
    %197 = vmatpush.msra.mxu0 0.0
    %198 = vmatpush.msra.mxu0 0.0
    %199 = vmatpush.msra.mxu0 0.0
    %200 = vmatpush.msra.mxu0 0.0
    %201 = vmatpush.msra.mxu0 0.0
    %202 = vmatpush.msra.mxu0 0.0
    %203 = vmatpush.msra.mxu0 0.0
    %204 = vmatpush.msra.mxu0 0.0
    %205 = vmatpush.msra.mxu0 0.0
    %206 = vmatpush.msra.mxu0 %v88
    %207 = vmatpush.msra.mxu0 %v85
    %208 = vmatmul.f32.gmra.mxu0 %v187
    %v209 = vpop.f32.mrf.mxu0
    %v210 = vadd.f32 0.0, %v209
    %211 = vmatmul.f32.gmra.mxu0 %v190
    %v212 = vpop.f32.mrf.mxu0
    %v213 = vadd.f32 0.0, %v212
    %214 = vdwg.mxu0
    %v215 = vperm.slane %v95, 1
    %217 = vrot.lane.b32.xlu0 %v215, 8
    %v218 = vpop.permute.xlu0 %217
    %v220 = vmul.f32 %v56, %v218
    %v221 = vmul.f32 %v59, %v218
    %224 = vrot.lane.b32.xlu0 %v220, 120
    %v225 = vpop.permute.xlu0 %224
    %226 = vrot.lane.b32.xlu0 %v221, 120
    %v227 = vpop.permute.xlu0 %226
    %v230 = vsel %vm31, %v225, 0.0
    %231 = vadd.xlane.f32.xlu0 %v230
    %v232 = vpop.xlane.xlu0 %231
    %v233 = vsel %vm31, %v227, 0.0
    %234 = vadd.xlane.f32.xlu0 %v233
    %v235 = vpop.xlane.xlu0 %234
    %v236 = vperm.slane %v94, 1
    %238 = vrot.lane.b32.xlu0 %v236, 8
    %v239 = vpop.permute.xlu0 %238
    %v241 = vmul.f32 %v85, %v239
    %v242 = vmul.f32 %v88, %v239
    %245 = vrot.lane.b32.xlu0 %v241, 120
    %v246 = vpop.permute.xlu0 %245
    %247 = vrot.lane.b32.xlu0 %v242, 120
    %v248 = vpop.permute.xlu0 %247
    %v251 = vsel %vm31, %v246, 0.0
    %252 = vadd.xlane.f32.xlu0 %v251
    %v253 = vpop.xlane.xlu0 %252
    %v254 = vsel %vm31, %v248, 0.0
    %255 = vadd.xlane.f32.xlu0 %v254
    %v256 = vpop.xlane.xlu0 %255
    %v258 = vsel %vm114, %v253, 0
    %v261 = vsel %vm114, %v256, 0
    %263 = vmatpush.xpose.msra.mxu0 0.0
    %264 = vmatpush.xpose.msra.mxu0 0.0
    %265 = vmatpush.xpose.msra.mxu0 0.0
    %266 = vmatpush.xpose.msra.mxu0 0.0
    %267 = vmatpush.xpose.msra.mxu0 0.0
    %268 = vmatpush.xpose.msra.mxu0 0.0
    %269 = vmatpush.xpose.msra.mxu0 0.0
    %270 = vmatpush.xpose.msra.mxu0 0.0
    %271 = vmatpush.xpose.msra.mxu0 0.0
    %272 = vmatpush.xpose.msra.mxu0 0.0
    %273 = vmatpush.xpose.msra.mxu0 0.0
    %274 = vmatpush.xpose.msra.mxu0 0.0
    %275 = vmatpush.xpose.msra.mxu0 0.0
    %276 = vmatpush.xpose.msra.mxu0 0.0
    %277 = vmatpush.xpose.msra.mxu0 %v261
    %278 = vmatpush.xpose.msra.mxu0 %v258
    %279 = vmatmul.f32.gmra.mxu0 %v116
    %v280 = vpop.f32.mrf.mxu0
    %v281 = vadd.f32 0.0, %v280
    %282 = vmatmul.f32.gmra.mxu0 %v116
    %v283 = vpop.f32.mrf.mxu0
    %v284 = vadd.f32 0.0, %v283
    %285 = vdwg.mxu0
    %v286 = vadd.f32 %v232, %v281
    %v287 = vadd.f32 %v235, %v284
    %vm288 = vcmp.gt.f32.partialorder %v286, 0.0
    %vm289 = vcmp.gt.f32.partialorder %v287, 0.0
    %v290 = vmul.f32 %v286, 0.2
    %v291 = vmul.f32 %v287, 0.2
    %v292 = vsel %vm288, %v286, %v290
    %v293 = vsel %vm289, %v287, %v291
    %v294 = vsel %vm159, %v292, -1e+30
    %v295 = vsel %vm160, %v293, -1e+30
    %v296 = vsel %vm163, %v294, -inf
    %297 = vmax.xlane.f32.xlu0 %v296
    %v298 = vpop.xlane.xlu0 %297
    %v299 = vsel %vm163, %v295, -inf
    %300 = vmax.xlane.f32.xlu0 %v299
    %v301 = vpop.xlane.xlu0 %300
    %v302 = vsub.f32 %v294, %v298
    %v303 = vsub.f32 %v295, %v301
    %v304 = vmul.f32 %v302, 1.442695
    %v305 = vpow.pop %v304
    %v306 = vmul.f32 %v303, 1.442695
    %v307 = vpow.pop %v306
    %v308 = vsel %vm163, %v305, 0.0
    %309 = vadd.xlane.f32.xlu0 %v308
    %v310 = vpop.xlane.xlu0 %309
    %v311 = vsel %vm163, %v307, 0.0
    %312 = vadd.xlane.f32.xlu0 %v311
    %v313 = vpop.xlane.xlu0 %312
    %v314 = vrcp.pop %v310
    %v315 = vrcp.pop %v313
    %v316 = vmul.f32 %v305, %v314
    %v317 = vmul.f32 %v307, %v315
    %320 = vrot.lane.b32.xlu0 %v85, 120
    %v321 = vpop.permute.xlu0 %320
    %322 = vrot.lane.b32.xlu0 %v88, 120
    %v323 = vpop.permute.xlu0 %322
    %v327 = vsel %vm163, %v316, 0
    %v330 = vsel %vm163, %v317, 0
    %332 = vmatpush.msra.mxu0 0.0
    %333 = vmatpush.msra.mxu0 0.0
    %334 = vmatpush.msra.mxu0 0.0
    %335 = vmatpush.msra.mxu0 0.0
    %336 = vmatpush.msra.mxu0 0.0
    %337 = vmatpush.msra.mxu0 0.0
    %338 = vmatpush.msra.mxu0 0.0
    %339 = vmatpush.msra.mxu0 0.0
    %340 = vmatpush.msra.mxu0 0.0
    %341 = vmatpush.msra.mxu0 0.0
    %342 = vmatpush.msra.mxu0 0.0
    %343 = vmatpush.msra.mxu0 0.0
    %344 = vmatpush.msra.mxu0 0.0
    %345 = vmatpush.msra.mxu0 0.0
    %346 = vmatpush.msra.mxu0 %v323
    %347 = vmatpush.msra.mxu0 %v321
    %348 = vmatmul.f32.gmra.mxu0 %v327
    %v349 = vpop.f32.mrf.mxu0
    %v350 = vadd.f32 0.0, %v349
    %351 = vmatmul.f32.gmra.mxu0 %v330
    %v352 = vpop.f32.mrf.mxu0
    %v353 = vadd.f32 0.0, %v352
    %354 = vdwg.mxu0
    %v355 = vperm.slane %v95, 2
    %357 = vrot.lane.b32.xlu0 %v355, 16
    %v358 = vpop.permute.xlu0 %357
    %v360 = vmul.f32 %v56, %v358
    %v361 = vmul.f32 %v59, %v358
    %364 = vrot.lane.b32.xlu0 %v360, 112
    %v365 = vpop.permute.xlu0 %364
    %366 = vrot.lane.b32.xlu0 %v361, 112
    %v367 = vpop.permute.xlu0 %366
    %v370 = vsel %vm31, %v365, 0.0
    %371 = vadd.xlane.f32.xlu0 %v370
    %v372 = vpop.xlane.xlu0 %371
    %v373 = vsel %vm31, %v367, 0.0
    %374 = vadd.xlane.f32.xlu0 %v373
    %v375 = vpop.xlane.xlu0 %374
    %v376 = vperm.slane %v94, 2
    %378 = vrot.lane.b32.xlu0 %v376, 16
    %v379 = vpop.permute.xlu0 %378
    %v381 = vmul.f32 %v85, %v379
    %v382 = vmul.f32 %v88, %v379
    %385 = vrot.lane.b32.xlu0 %v381, 112
    %v386 = vpop.permute.xlu0 %385
    %387 = vrot.lane.b32.xlu0 %v382, 112
    %v388 = vpop.permute.xlu0 %387
    %v391 = vsel %vm31, %v386, 0.0
    %392 = vadd.xlane.f32.xlu0 %v391
    %v393 = vpop.xlane.xlu0 %392
    %v394 = vsel %vm31, %v388, 0.0
    %395 = vadd.xlane.f32.xlu0 %v394
    %v396 = vpop.xlane.xlu0 %395
    %v398 = vsel %vm114, %v393, 0
    %v401 = vsel %vm114, %v396, 0
    %403 = vmatpush.xpose.msra.mxu0 0.0
    %404 = vmatpush.xpose.msra.mxu0 0.0
    %405 = vmatpush.xpose.msra.mxu0 0.0
    %406 = vmatpush.xpose.msra.mxu0 0.0
    %407 = vmatpush.xpose.msra.mxu0 0.0
    %408 = vmatpush.xpose.msra.mxu0 0.0
    %409 = vmatpush.xpose.msra.mxu0 0.0
    %410 = vmatpush.xpose.msra.mxu0 0.0
    %411 = vmatpush.xpose.msra.mxu0 0.0
    %412 = vmatpush.xpose.msra.mxu0 0.0
    %413 = vmatpush.xpose.msra.mxu0 0.0
    %414 = vmatpush.xpose.msra.mxu0 0.0
    %415 = vmatpush.xpose.msra.mxu0 0.0
    %416 = vmatpush.xpose.msra.mxu0 0.0
    %417 = vmatpush.xpose.msra.mxu0 %v401
    %418 = vmatpush.xpose.msra.mxu0 %v398
    %419 = vmatmul.f32.gmra.mxu0 %v116
    %v420 = vpop.f32.mrf.mxu0
    %v421 = vadd.f32 0.0, %v420
    %422 = vmatmul.f32.gmra.mxu0 %v116
    %v423 = vpop.f32.mrf.mxu0
    %v424 = vadd.f32 0.0, %v423
    %425 = vdwg.mxu0
    %v426 = vadd.f32 %v372, %v421
    %v427 = vadd.f32 %v375, %v424
    %vm428 = vcmp.gt.f32.partialorder %v426, 0.0
    %vm429 = vcmp.gt.f32.partialorder %v427, 0.0
    %v430 = vmul.f32 %v426, 0.2
    %v431 = vmul.f32 %v427, 0.2
    %v432 = vsel %vm428, %v426, %v430
    %v433 = vsel %vm429, %v427, %v431
    %v434 = vsel %vm159, %v432, -1e+30
    %v435 = vsel %vm160, %v433, -1e+30
    %v436 = vsel %vm163, %v434, -inf
    %437 = vmax.xlane.f32.xlu0 %v436
    %v438 = vpop.xlane.xlu0 %437
    %v439 = vsel %vm163, %v435, -inf
    %440 = vmax.xlane.f32.xlu0 %v439
    %v441 = vpop.xlane.xlu0 %440
    %v442 = vsub.f32 %v434, %v438
    %v443 = vsub.f32 %v435, %v441
    %v444 = vmul.f32 %v442, 1.442695
    %v445 = vpow.pop %v444
    %v446 = vmul.f32 %v443, 1.442695
    %v447 = vpow.pop %v446
    %v448 = vsel %vm163, %v445, 0.0
    %449 = vadd.xlane.f32.xlu0 %v448
    %v450 = vpop.xlane.xlu0 %449
    %v451 = vsel %vm163, %v447, 0.0
    %452 = vadd.xlane.f32.xlu0 %v451
    %v453 = vpop.xlane.xlu0 %452
    %v454 = vrcp.pop %v450
    %v455 = vrcp.pop %v453
    %v456 = vmul.f32 %v445, %v454
    %v457 = vmul.f32 %v447, %v455
    %458 = vrot.lane.b32.xlu0 %v85, 112
    %v459 = vpop.permute.xlu0 %458
    %460 = vrot.lane.b32.xlu0 %v88, 112
    %v461 = vpop.permute.xlu0 %460
    %v465 = vsel %vm163, %v456, 0
    %v468 = vsel %vm163, %v457, 0
    %470 = vmatpush.msra.mxu0 0.0
    %471 = vmatpush.msra.mxu0 0.0
    %472 = vmatpush.msra.mxu0 0.0
    %473 = vmatpush.msra.mxu0 0.0
    %474 = vmatpush.msra.mxu0 0.0
    %475 = vmatpush.msra.mxu0 0.0
    %476 = vmatpush.msra.mxu0 0.0
    %477 = vmatpush.msra.mxu0 0.0
    %478 = vmatpush.msra.mxu0 0.0
    %479 = vmatpush.msra.mxu0 0.0
    %480 = vmatpush.msra.mxu0 0.0
    %481 = vmatpush.msra.mxu0 0.0
    %482 = vmatpush.msra.mxu0 0.0
    %483 = vmatpush.msra.mxu0 0.0
    %484 = vmatpush.msra.mxu0 %v461
    %485 = vmatpush.msra.mxu0 %v459
    %486 = vmatmul.f32.gmra.mxu0 %v465
    %v487 = vpop.f32.mrf.mxu0
    %v488 = vadd.f32 0.0, %v487
    %489 = vmatmul.f32.gmra.mxu0 %v468
    %v490 = vpop.f32.mrf.mxu0
    %v491 = vadd.f32 0.0, %v490
    %492 = vdwg.mxu0
    %v493 = vperm.slane %v95, 3
    %495 = vrot.lane.b32.xlu0 %v493, 24
    %v496 = vpop.permute.xlu0 %495
    %v498 = vmul.f32 %v56, %v496
    %v499 = vmul.f32 %v59, %v496
    %502 = vrot.lane.b32.xlu0 %v498, 104
    %v503 = vpop.permute.xlu0 %502
    %504 = vrot.lane.b32.xlu0 %v499, 104
    %v505 = vpop.permute.xlu0 %504
    %v508 = vsel %vm31, %v503, 0.0
    %509 = vadd.xlane.f32.xlu0 %v508
    %v510 = vpop.xlane.xlu0 %509
    %v511 = vsel %vm31, %v505, 0.0
    %512 = vadd.xlane.f32.xlu0 %v511
    %v513 = vpop.xlane.xlu0 %512
    %v514 = vperm.slane %v94, 3
    %516 = vrot.lane.b32.xlu0 %v514, 24
    %v517 = vpop.permute.xlu0 %516
    %v519 = vmul.f32 %v85, %v517
    %v520 = vmul.f32 %v88, %v517
    %523 = vrot.lane.b32.xlu0 %v519, 104
    %v524 = vpop.permute.xlu0 %523
    %525 = vrot.lane.b32.xlu0 %v520, 104
    %v526 = vpop.permute.xlu0 %525
    %v529 = vsel %vm31, %v524, 0.0
    %530 = vadd.xlane.f32.xlu0 %v529
    %v531 = vpop.xlane.xlu0 %530
    %v532 = vsel %vm31, %v526, 0.0
    %533 = vadd.xlane.f32.xlu0 %v532
    %v534 = vpop.xlane.xlu0 %533
    %v536 = vsel %vm114, %v531, 0
    %v539 = vsel %vm114, %v534, 0
    %541 = vmatpush.xpose.msra.mxu0 0.0
    %542 = vmatpush.xpose.msra.mxu0 0.0
    %543 = vmatpush.xpose.msra.mxu0 0.0
    %544 = vmatpush.xpose.msra.mxu0 0.0
    %545 = vmatpush.xpose.msra.mxu0 0.0
    %546 = vmatpush.xpose.msra.mxu0 0.0
    %547 = vmatpush.xpose.msra.mxu0 0.0
    %548 = vmatpush.xpose.msra.mxu0 0.0
    %549 = vmatpush.xpose.msra.mxu0 0.0
    %550 = vmatpush.xpose.msra.mxu0 0.0
    %551 = vmatpush.xpose.msra.mxu0 0.0
    %552 = vmatpush.xpose.msra.mxu0 0.0
    %553 = vmatpush.xpose.msra.mxu0 0.0
    %554 = vmatpush.xpose.msra.mxu0 0.0
    %555 = vmatpush.xpose.msra.mxu0 %v539
    %556 = vmatpush.xpose.msra.mxu0 %v536
    %557 = vmatmul.f32.gmra.mxu0 %v116
    %v558 = vpop.f32.mrf.mxu0
    %v559 = vadd.f32 0.0, %v558
    %560 = vmatmul.f32.gmra.mxu0 %v116
    %v561 = vpop.f32.mrf.mxu0
    %v562 = vadd.f32 0.0, %v561
    %563 = vdwg.mxu0
    %v564 = vadd.f32 %v510, %v559
    %v565 = vadd.f32 %v513, %v562
    %vm566 = vcmp.gt.f32.partialorder %v564, 0.0
    %vm567 = vcmp.gt.f32.partialorder %v565, 0.0
    %v568 = vmul.f32 %v564, 0.2
    %v569 = vmul.f32 %v565, 0.2
    %v570 = vsel %vm566, %v564, %v568
    %v571 = vsel %vm567, %v565, %v569
    %v572 = vsel %vm159, %v570, -1e+30
    %v573 = vsel %vm160, %v571, -1e+30
    %v574 = vsel %vm163, %v572, -inf
    %575 = vmax.xlane.f32.xlu0 %v574
    %v576 = vpop.xlane.xlu0 %575
    %v577 = vsel %vm163, %v573, -inf
    %578 = vmax.xlane.f32.xlu0 %v577
    %v579 = vpop.xlane.xlu0 %578
    %v580 = vsub.f32 %v572, %v576
    %v581 = vsub.f32 %v573, %v579
    %v582 = vmul.f32 %v580, 1.442695
    %v583 = vpow.pop %v582
    %v584 = vmul.f32 %v581, 1.442695
    %v585 = vpow.pop %v584
    %v586 = vsel %vm163, %v583, 0.0
    %587 = vadd.xlane.f32.xlu0 %v586
    %v588 = vpop.xlane.xlu0 %587
    %v589 = vsel %vm163, %v585, 0.0
    %590 = vadd.xlane.f32.xlu0 %v589
    %v591 = vpop.xlane.xlu0 %590
    %v592 = vrcp.pop %v588
    %v593 = vrcp.pop %v591
    %v594 = vmul.f32 %v583, %v592
    %v595 = vmul.f32 %v585, %v593
    %596 = vrot.lane.b32.xlu0 %v85, 104
    %v597 = vpop.permute.xlu0 %596
    %598 = vrot.lane.b32.xlu0 %v88, 104
    %v599 = vpop.permute.xlu0 %598
    %v603 = vsel %vm163, %v594, 0
    %v606 = vsel %vm163, %v595, 0
    %608 = vmatpush.msra.mxu0 0.0
    %609 = vmatpush.msra.mxu0 0.0
    %610 = vmatpush.msra.mxu0 0.0
    %611 = vmatpush.msra.mxu0 0.0
    %612 = vmatpush.msra.mxu0 0.0
    %613 = vmatpush.msra.mxu0 0.0
    %614 = vmatpush.msra.mxu0 0.0
    %615 = vmatpush.msra.mxu0 0.0
    %616 = vmatpush.msra.mxu0 0.0
    %617 = vmatpush.msra.mxu0 0.0
    %618 = vmatpush.msra.mxu0 0.0
    %619 = vmatpush.msra.mxu0 0.0
    %620 = vmatpush.msra.mxu0 0.0
    %621 = vmatpush.msra.mxu0 0.0
    %622 = vmatpush.msra.mxu0 %v599
    %623 = vmatpush.msra.mxu0 %v597
    %624 = vmatmul.f32.gmra.mxu0 %v603
    %v625 = vpop.f32.mrf.mxu0
    %v626 = vadd.f32 0.0, %v625
    %627 = vmatmul.f32.gmra.mxu0 %v606
    %v628 = vpop.f32.mrf.mxu0
    %v629 = vadd.f32 0.0, %v628
    %630 = vdwg.mxu0
    %v631 = vperm.slane %v95, 4
    %633 = vrot.lane.b32.xlu0 %v631, 32
    %v634 = vpop.permute.xlu0 %633
    %v636 = vmul.f32 %v56, %v634
    %v637 = vmul.f32 %v59, %v634
    %640 = vrot.lane.b32.xlu0 %v636, 96
    %v641 = vpop.permute.xlu0 %640
    %642 = vrot.lane.b32.xlu0 %v637, 96
    %v643 = vpop.permute.xlu0 %642
    %v646 = vsel %vm31, %v641, 0.0
    %647 = vadd.xlane.f32.xlu0 %v646
    %v648 = vpop.xlane.xlu0 %647
    %v649 = vsel %vm31, %v643, 0.0
    %650 = vadd.xlane.f32.xlu0 %v649
    %v651 = vpop.xlane.xlu0 %650
    %v652 = vperm.slane %v94, 4
    %654 = vrot.lane.b32.xlu0 %v652, 32
    %v655 = vpop.permute.xlu0 %654
    %v657 = vmul.f32 %v85, %v655
    %v658 = vmul.f32 %v88, %v655
    %661 = vrot.lane.b32.xlu0 %v657, 96
    %v662 = vpop.permute.xlu0 %661
    %663 = vrot.lane.b32.xlu0 %v658, 96
    %v664 = vpop.permute.xlu0 %663
    %v667 = vsel %vm31, %v662, 0.0
    %668 = vadd.xlane.f32.xlu0 %v667
    %v669 = vpop.xlane.xlu0 %668
    %v670 = vsel %vm31, %v664, 0.0
    %671 = vadd.xlane.f32.xlu0 %v670
    %v672 = vpop.xlane.xlu0 %671
    %v674 = vsel %vm114, %v669, 0
    %v677 = vsel %vm114, %v672, 0
    %679 = vmatpush.xpose.msra.mxu0 0.0
    %680 = vmatpush.xpose.msra.mxu0 0.0
    %681 = vmatpush.xpose.msra.mxu0 0.0
    %682 = vmatpush.xpose.msra.mxu0 0.0
    %683 = vmatpush.xpose.msra.mxu0 0.0
    %684 = vmatpush.xpose.msra.mxu0 0.0
    %685 = vmatpush.xpose.msra.mxu0 0.0
    %686 = vmatpush.xpose.msra.mxu0 0.0
    %687 = vmatpush.xpose.msra.mxu0 0.0
    %688 = vmatpush.xpose.msra.mxu0 0.0
    %689 = vmatpush.xpose.msra.mxu0 0.0
    %690 = vmatpush.xpose.msra.mxu0 0.0
    %691 = vmatpush.xpose.msra.mxu0 0.0
    %692 = vmatpush.xpose.msra.mxu0 0.0
    %693 = vmatpush.xpose.msra.mxu0 %v677
    %694 = vmatpush.xpose.msra.mxu0 %v674
    %695 = vmatmul.f32.gmra.mxu0 %v116
    %v696 = vpop.f32.mrf.mxu0
    %v697 = vadd.f32 0.0, %v696
    %698 = vmatmul.f32.gmra.mxu0 %v116
    %v699 = vpop.f32.mrf.mxu0
    %v700 = vadd.f32 0.0, %v699
    %701 = vdwg.mxu0
    %v702 = vadd.f32 %v648, %v697
    %v703 = vadd.f32 %v651, %v700
    %vm704 = vcmp.gt.f32.partialorder %v702, 0.0
    %vm705 = vcmp.gt.f32.partialorder %v703, 0.0
    %v706 = vmul.f32 %v702, 0.2
    %v707 = vmul.f32 %v703, 0.2
    %v708 = vsel %vm704, %v702, %v706
    %v709 = vsel %vm705, %v703, %v707
    %v710 = vsel %vm159, %v708, -1e+30
    %v711 = vsel %vm160, %v709, -1e+30
    %v712 = vsel %vm163, %v710, -inf
    %713 = vmax.xlane.f32.xlu0 %v712
    %v714 = vpop.xlane.xlu0 %713
    %v715 = vsel %vm163, %v711, -inf
    %716 = vmax.xlane.f32.xlu0 %v715
    %v717 = vpop.xlane.xlu0 %716
    %v718 = vsub.f32 %v710, %v714
    %v719 = vsub.f32 %v711, %v717
    %v720 = vmul.f32 %v718, 1.442695
    %v721 = vpow.pop %v720
    %v722 = vmul.f32 %v719, 1.442695
    %v723 = vpow.pop %v722
    %v724 = vsel %vm163, %v721, 0.0
    %725 = vadd.xlane.f32.xlu0 %v724
    %v726 = vpop.xlane.xlu0 %725
    %v727 = vsel %vm163, %v723, 0.0
    %728 = vadd.xlane.f32.xlu0 %v727
    %v729 = vpop.xlane.xlu0 %728
    %v730 = vrcp.pop %v726
    %v731 = vrcp.pop %v729
    %v732 = vmul.f32 %v721, %v730
    %v733 = vmul.f32 %v723, %v731
    %734 = vrot.lane.b32.xlu0 %v85, 96
    %v735 = vpop.permute.xlu0 %734
    %736 = vrot.lane.b32.xlu0 %v88, 96
    %v737 = vpop.permute.xlu0 %736
    %v741 = vsel %vm163, %v732, 0
    %v744 = vsel %vm163, %v733, 0
    %746 = vmatpush.msra.mxu0 0.0
    %747 = vmatpush.msra.mxu0 0.0
    %748 = vmatpush.msra.mxu0 0.0
    %749 = vmatpush.msra.mxu0 0.0
    %750 = vmatpush.msra.mxu0 0.0
    %751 = vmatpush.msra.mxu0 0.0
    %752 = vmatpush.msra.mxu0 0.0
    %753 = vmatpush.msra.mxu0 0.0
    %754 = vmatpush.msra.mxu0 0.0
    %755 = vmatpush.msra.mxu0 0.0
    %756 = vmatpush.msra.mxu0 0.0
    %757 = vmatpush.msra.mxu0 0.0
    %758 = vmatpush.msra.mxu0 0.0
    %759 = vmatpush.msra.mxu0 0.0
    %760 = vmatpush.msra.mxu0 %v737
    %761 = vmatpush.msra.mxu0 %v735
    %762 = vmatmul.f32.gmra.mxu0 %v741
    %v763 = vpop.f32.mrf.mxu0
    %v764 = vadd.f32 0.0, %v763
    %765 = vmatmul.f32.gmra.mxu0 %v744
    %v766 = vpop.f32.mrf.mxu0
    %v767 = vadd.f32 0.0, %v766
    %768 = vdwg.mxu0
    %v769 = vperm.slane %v95, 5
    %771 = vrot.lane.b32.xlu0 %v769, 40
    %v772 = vpop.permute.xlu0 %771
    %v774 = vmul.f32 %v56, %v772
    %v775 = vmul.f32 %v59, %v772
    %778 = vrot.lane.b32.xlu0 %v774, 88
    %v779 = vpop.permute.xlu0 %778
    %780 = vrot.lane.b32.xlu0 %v775, 88
    %v781 = vpop.permute.xlu0 %780
    %v784 = vsel %vm31, %v779, 0.0
    %785 = vadd.xlane.f32.xlu0 %v784
    %v786 = vpop.xlane.xlu0 %785
    %v787 = vsel %vm31, %v781, 0.0
    %788 = vadd.xlane.f32.xlu0 %v787
    %v789 = vpop.xlane.xlu0 %788
    %v790 = vperm.slane %v94, 5
    %792 = vrot.lane.b32.xlu0 %v790, 40
    %v793 = vpop.permute.xlu0 %792
    %v795 = vmul.f32 %v85, %v793
    %v796 = vmul.f32 %v88, %v793
    %799 = vrot.lane.b32.xlu0 %v795, 88
    %v800 = vpop.permute.xlu0 %799
    %801 = vrot.lane.b32.xlu0 %v796, 88
    %v802 = vpop.permute.xlu0 %801
    %v805 = vsel %vm31, %v800, 0.0
    %806 = vadd.xlane.f32.xlu0 %v805
    %v807 = vpop.xlane.xlu0 %806
    %v808 = vsel %vm31, %v802, 0.0
    %809 = vadd.xlane.f32.xlu0 %v808
    %v810 = vpop.xlane.xlu0 %809
    %v812 = vsel %vm114, %v807, 0
    %v815 = vsel %vm114, %v810, 0
    %817 = vmatpush.xpose.msra.mxu0 0.0
    %818 = vmatpush.xpose.msra.mxu0 0.0
    %819 = vmatpush.xpose.msra.mxu0 0.0
    %820 = vmatpush.xpose.msra.mxu0 0.0
    %821 = vmatpush.xpose.msra.mxu0 0.0
    %822 = vmatpush.xpose.msra.mxu0 0.0
    %823 = vmatpush.xpose.msra.mxu0 0.0
    %824 = vmatpush.xpose.msra.mxu0 0.0
    %825 = vmatpush.xpose.msra.mxu0 0.0
    %826 = vmatpush.xpose.msra.mxu0 0.0
    %827 = vmatpush.xpose.msra.mxu0 0.0
    %828 = vmatpush.xpose.msra.mxu0 0.0
    %829 = vmatpush.xpose.msra.mxu0 0.0
    %830 = vmatpush.xpose.msra.mxu0 0.0
    %831 = vmatpush.xpose.msra.mxu0 %v815
    %832 = vmatpush.xpose.msra.mxu0 %v812
    %833 = vmatmul.f32.gmra.mxu0 %v116
    %v834 = vpop.f32.mrf.mxu0
    %v835 = vadd.f32 0.0, %v834
    %836 = vmatmul.f32.gmra.mxu0 %v116
    %v837 = vpop.f32.mrf.mxu0
    %v838 = vadd.f32 0.0, %v837
    %839 = vdwg.mxu0
    %v840 = vadd.f32 %v786, %v835
    %v841 = vadd.f32 %v789, %v838
    %vm842 = vcmp.gt.f32.partialorder %v840, 0.0
    %vm843 = vcmp.gt.f32.partialorder %v841, 0.0
    %v844 = vmul.f32 %v840, 0.2
    %v845 = vmul.f32 %v841, 0.2
    %v846 = vsel %vm842, %v840, %v844
    %v847 = vsel %vm843, %v841, %v845
    %v848 = vsel %vm159, %v846, -1e+30
    %v849 = vsel %vm160, %v847, -1e+30
    %v850 = vsel %vm163, %v848, -inf
    %851 = vmax.xlane.f32.xlu0 %v850
    %v852 = vpop.xlane.xlu0 %851
    %v853 = vsel %vm163, %v849, -inf
    %854 = vmax.xlane.f32.xlu0 %v853
    %v855 = vpop.xlane.xlu0 %854
    %v856 = vsub.f32 %v848, %v852
    %v857 = vsub.f32 %v849, %v855
    %v858 = vmul.f32 %v856, 1.442695
    %v859 = vpow.pop %v858
    %v860 = vmul.f32 %v857, 1.442695
    %v861 = vpow.pop %v860
    %v862 = vsel %vm163, %v859, 0.0
    %863 = vadd.xlane.f32.xlu0 %v862
    %v864 = vpop.xlane.xlu0 %863
    %v865 = vsel %vm163, %v861, 0.0
    %866 = vadd.xlane.f32.xlu0 %v865
    %v867 = vpop.xlane.xlu0 %866
    %v868 = vrcp.pop %v864
    %v869 = vrcp.pop %v867
    %v870 = vmul.f32 %v859, %v868
    %v871 = vmul.f32 %v861, %v869
    %872 = vrot.lane.b32.xlu0 %v85, 88
    %v873 = vpop.permute.xlu0 %872
    %874 = vrot.lane.b32.xlu0 %v88, 88
    %v875 = vpop.permute.xlu0 %874
    %v879 = vsel %vm163, %v870, 0
    %v882 = vsel %vm163, %v871, 0
    %884 = vmatpush.msra.mxu0 0.0
    %885 = vmatpush.msra.mxu0 0.0
    %886 = vmatpush.msra.mxu0 0.0
    %887 = vmatpush.msra.mxu0 0.0
    %888 = vmatpush.msra.mxu0 0.0
    %889 = vmatpush.msra.mxu0 0.0
    %890 = vmatpush.msra.mxu0 0.0
    %891 = vmatpush.msra.mxu0 0.0
    %892 = vmatpush.msra.mxu0 0.0
    %893 = vmatpush.msra.mxu0 0.0
    %894 = vmatpush.msra.mxu0 0.0
    %895 = vmatpush.msra.mxu0 0.0
    %896 = vmatpush.msra.mxu0 0.0
    %897 = vmatpush.msra.mxu0 0.0
    %898 = vmatpush.msra.mxu0 %v875
    %899 = vmatpush.msra.mxu0 %v873
    %900 = vmatmul.f32.gmra.mxu0 %v879
    %v901 = vpop.f32.mrf.mxu0
    %v902 = vadd.f32 0.0, %v901
    %903 = vmatmul.f32.gmra.mxu0 %v882
    %v904 = vpop.f32.mrf.mxu0
    %v905 = vadd.f32 0.0, %v904
    %906 = vdwg.mxu0
    %v907 = vperm.slane %v95, 6
    %909 = vrot.lane.b32.xlu0 %v907, 48
    %v910 = vpop.permute.xlu0 %909
    %v912 = vmul.f32 %v56, %v910
    %v913 = vmul.f32 %v59, %v910
    %916 = vrot.lane.b32.xlu0 %v912, 80
    %v917 = vpop.permute.xlu0 %916
    %918 = vrot.lane.b32.xlu0 %v913, 80
    %v919 = vpop.permute.xlu0 %918
    %v922 = vsel %vm31, %v917, 0.0
    %923 = vadd.xlane.f32.xlu0 %v922
    %v924 = vpop.xlane.xlu0 %923
    %v925 = vsel %vm31, %v919, 0.0
    %926 = vadd.xlane.f32.xlu0 %v925
    %v927 = vpop.xlane.xlu0 %926
    %v928 = vperm.slane %v94, 6
    %930 = vrot.lane.b32.xlu0 %v928, 48
    %v931 = vpop.permute.xlu0 %930
    %v933 = vmul.f32 %v85, %v931
    %v934 = vmul.f32 %v88, %v931
    %937 = vrot.lane.b32.xlu0 %v933, 80
    %v938 = vpop.permute.xlu0 %937
    %939 = vrot.lane.b32.xlu0 %v934, 80
    %v940 = vpop.permute.xlu0 %939
    %v943 = vsel %vm31, %v938, 0.0
    %944 = vadd.xlane.f32.xlu0 %v943
    %v945 = vpop.xlane.xlu0 %944
    %v946 = vsel %vm31, %v940, 0.0
    %947 = vadd.xlane.f32.xlu0 %v946
    %v948 = vpop.xlane.xlu0 %947
    %v950 = vsel %vm114, %v945, 0
    %v953 = vsel %vm114, %v948, 0
    %955 = vmatpush.xpose.msra.mxu0 0.0
    %956 = vmatpush.xpose.msra.mxu0 0.0
    %957 = vmatpush.xpose.msra.mxu0 0.0
    %958 = vmatpush.xpose.msra.mxu0 0.0
    %959 = vmatpush.xpose.msra.mxu0 0.0
    %960 = vmatpush.xpose.msra.mxu0 0.0
    %961 = vmatpush.xpose.msra.mxu0 0.0
    %962 = vmatpush.xpose.msra.mxu0 0.0
    %963 = vmatpush.xpose.msra.mxu0 0.0
    %964 = vmatpush.xpose.msra.mxu0 0.0
    %965 = vmatpush.xpose.msra.mxu0 0.0
    %966 = vmatpush.xpose.msra.mxu0 0.0
    %967 = vmatpush.xpose.msra.mxu0 0.0
    %968 = vmatpush.xpose.msra.mxu0 0.0
    %969 = vmatpush.xpose.msra.mxu0 %v953
    %970 = vmatpush.xpose.msra.mxu0 %v950
    %971 = vmatmul.f32.gmra.mxu0 %v116
    %v972 = vpop.f32.mrf.mxu0
    %v973 = vadd.f32 0.0, %v972
    %974 = vmatmul.f32.gmra.mxu0 %v116
    %v975 = vpop.f32.mrf.mxu0
    %v976 = vadd.f32 0.0, %v975
    %977 = vdwg.mxu0
    %v978 = vadd.f32 %v924, %v973
    %v979 = vadd.f32 %v927, %v976
    %vm980 = vcmp.gt.f32.partialorder %v978, 0.0
    %vm981 = vcmp.gt.f32.partialorder %v979, 0.0
    %v982 = vmul.f32 %v978, 0.2
    %v983 = vmul.f32 %v979, 0.2
    %v984 = vsel %vm980, %v978, %v982
    %v985 = vsel %vm981, %v979, %v983
    %v986 = vsel %vm159, %v984, -1e+30
    %v987 = vsel %vm160, %v985, -1e+30
    %v988 = vsel %vm163, %v986, -inf
    %989 = vmax.xlane.f32.xlu0 %v988
    %v990 = vpop.xlane.xlu0 %989
    %v991 = vsel %vm163, %v987, -inf
    %992 = vmax.xlane.f32.xlu0 %v991
    %v993 = vpop.xlane.xlu0 %992
    %v994 = vsub.f32 %v986, %v990
    %v995 = vsub.f32 %v987, %v993
    %v996 = vmul.f32 %v994, 1.442695
    %v997 = vpow.pop %v996
    %v998 = vmul.f32 %v995, 1.442695
    %v999 = vpow.pop %v998
    %v1000 = vsel %vm163, %v997, 0.0
    %1001 = vadd.xlane.f32.xlu0 %v1000
    %v1002 = vpop.xlane.xlu0 %1001
    %v1003 = vsel %vm163, %v999, 0.0
    %1004 = vadd.xlane.f32.xlu0 %v1003
    %v1005 = vpop.xlane.xlu0 %1004
    %v1006 = vrcp.pop %v1002
    %v1007 = vrcp.pop %v1005
    %v1008 = vmul.f32 %v997, %v1006
    %v1009 = vmul.f32 %v999, %v1007
    %1010 = vrot.lane.b32.xlu0 %v85, 80
    %v1011 = vpop.permute.xlu0 %1010
    %1012 = vrot.lane.b32.xlu0 %v88, 80
    %v1013 = vpop.permute.xlu0 %1012
    %v1017 = vsel %vm163, %v1008, 0
    %v1020 = vsel %vm163, %v1009, 0
    %1022 = vmatpush.msra.mxu0 0.0
    %1023 = vmatpush.msra.mxu0 0.0
    %1024 = vmatpush.msra.mxu0 0.0
    %1025 = vmatpush.msra.mxu0 0.0
    %1026 = vmatpush.msra.mxu0 0.0
    %1027 = vmatpush.msra.mxu0 0.0
    %1028 = vmatpush.msra.mxu0 0.0
    %1029 = vmatpush.msra.mxu0 0.0
    %1030 = vmatpush.msra.mxu0 0.0
    %1031 = vmatpush.msra.mxu0 0.0
    %1032 = vmatpush.msra.mxu0 0.0
    %1033 = vmatpush.msra.mxu0 0.0
    %1034 = vmatpush.msra.mxu0 0.0
    %1035 = vmatpush.msra.mxu0 0.0
    %1036 = vmatpush.msra.mxu0 %v1013
    %1037 = vmatpush.msra.mxu0 %v1011
    %1038 = vmatmul.f32.gmra.mxu0 %v1017
    %v1039 = vpop.f32.mrf.mxu0
    %v1040 = vadd.f32 0.0, %v1039
    %1041 = vmatmul.f32.gmra.mxu0 %v1020
    %v1042 = vpop.f32.mrf.mxu0
    %v1043 = vadd.f32 0.0, %v1042
    %1044 = vdwg.mxu0
    %v1045 = vperm.slane %v95, 7
    %1047 = vrot.lane.b32.xlu0 %v1045, 56
    %v1048 = vpop.permute.xlu0 %1047
    %v1050 = vmul.f32 %v56, %v1048
    %v1051 = vmul.f32 %v59, %v1048
    %1054 = vrot.lane.b32.xlu0 %v1050, 72
    %v1055 = vpop.permute.xlu0 %1054
    %1056 = vrot.lane.b32.xlu0 %v1051, 72
    %v1057 = vpop.permute.xlu0 %1056
    %v1060 = vsel %vm31, %v1055, 0.0
    %1061 = vadd.xlane.f32.xlu0 %v1060
    %v1062 = vpop.xlane.xlu0 %1061
    %v1063 = vsel %vm31, %v1057, 0.0
    %1064 = vadd.xlane.f32.xlu0 %v1063
    %v1065 = vpop.xlane.xlu0 %1064
    %v1066 = vperm.slane %v94, 7
    %1068 = vrot.lane.b32.xlu0 %v1066, 56
    %v1069 = vpop.permute.xlu0 %1068
    %v1071 = vmul.f32 %v85, %v1069
    %v1072 = vmul.f32 %v88, %v1069
    %1075 = vrot.lane.b32.xlu0 %v1071, 72
    %v1076 = vpop.permute.xlu0 %1075
    %1077 = vrot.lane.b32.xlu0 %v1072, 72
    %v1078 = vpop.permute.xlu0 %1077
    %v1081 = vsel %vm31, %v1076, 0.0
    %1082 = vadd.xlane.f32.xlu0 %v1081
    %v1083 = vpop.xlane.xlu0 %1082
    %v1084 = vsel %vm31, %v1078, 0.0
    %1085 = vadd.xlane.f32.xlu0 %v1084
    %v1086 = vpop.xlane.xlu0 %1085
    %v1088 = vsel %vm114, %v1083, 0
    %v1091 = vsel %vm114, %v1086, 0
    %1093 = vmatpush.xpose.msra.mxu0 0.0
    %1094 = vmatpush.xpose.msra.mxu0 0.0
    %1095 = vmatpush.xpose.msra.mxu0 0.0
    %1096 = vmatpush.xpose.msra.mxu0 0.0
    %1097 = vmatpush.xpose.msra.mxu0 0.0
    %1098 = vmatpush.xpose.msra.mxu0 0.0
    %1099 = vmatpush.xpose.msra.mxu0 0.0
    %1100 = vmatpush.xpose.msra.mxu0 0.0
    %1101 = vmatpush.xpose.msra.mxu0 0.0
    %1102 = vmatpush.xpose.msra.mxu0 0.0
    %1103 = vmatpush.xpose.msra.mxu0 0.0
    %1104 = vmatpush.xpose.msra.mxu0 0.0
    %1105 = vmatpush.xpose.msra.mxu0 0.0
    %1106 = vmatpush.xpose.msra.mxu0 0.0
    %1107 = vmatpush.xpose.msra.mxu0 %v1091
    %1108 = vmatpush.xpose.msra.mxu0 %v1088
    %1109 = vmatmul.f32.gmra.mxu0 %v116
    %v1110 = vpop.f32.mrf.mxu0
    %v1111 = vadd.f32 0.0, %v1110
    %1112 = vmatmul.f32.gmra.mxu0 %v116
    %v1113 = vpop.f32.mrf.mxu0
    %v1114 = vadd.f32 0.0, %v1113
    %1115 = vdwg.mxu0
    %v1116 = vadd.f32 %v1062, %v1111
    %v1117 = vadd.f32 %v1065, %v1114
    %vm1118 = vcmp.gt.f32.partialorder %v1116, 0.0
    %vm1119 = vcmp.gt.f32.partialorder %v1117, 0.0
    %v1120 = vmul.f32 %v1116, 0.2
    %v1121 = vmul.f32 %v1117, 0.2
    %v1122 = vsel %vm1118, %v1116, %v1120
    %v1123 = vsel %vm1119, %v1117, %v1121
    %v1124 = vsel %vm159, %v1122, -1e+30
    %v1125 = vsel %vm160, %v1123, -1e+30
    %v1126 = vsel %vm163, %v1124, -inf
    %1127 = vmax.xlane.f32.xlu0 %v1126
    %v1128 = vpop.xlane.xlu0 %1127
    %v1129 = vsel %vm163, %v1125, -inf
    %1130 = vmax.xlane.f32.xlu0 %v1129
    %v1131 = vpop.xlane.xlu0 %1130
    %v1132 = vsub.f32 %v1124, %v1128
    %v1133 = vsub.f32 %v1125, %v1131
    %v1134 = vmul.f32 %v1132, 1.442695
    %v1135 = vpow.pop %v1134
    %v1136 = vmul.f32 %v1133, 1.442695
    %v1137 = vpow.pop %v1136
    %v1138 = vsel %vm163, %v1135, 0.0
    %1139 = vadd.xlane.f32.xlu0 %v1138
    %v1140 = vpop.xlane.xlu0 %1139
    %v1141 = vsel %vm163, %v1137, 0.0
    %1142 = vadd.xlane.f32.xlu0 %v1141
    %v1143 = vpop.xlane.xlu0 %1142
    %v1144 = vrcp.pop %v1140
    %v1145 = vrcp.pop %v1143
    %v1146 = vmul.f32 %v1135, %v1144
    %v1147 = vmul.f32 %v1137, %v1145
    %1148 = vrot.lane.b32.xlu0 %v85, 72
    %v1149 = vpop.permute.xlu0 %1148
    %1150 = vrot.lane.b32.xlu0 %v88, 72
    %v1151 = vpop.permute.xlu0 %1150
    %v1155 = vsel %vm163, %v1146, 0
    %v1158 = vsel %vm163, %v1147, 0
    %1160 = vmatpush.msra.mxu0 0.0
    %1161 = vmatpush.msra.mxu0 0.0
    %1162 = vmatpush.msra.mxu0 0.0
    %1163 = vmatpush.msra.mxu0 0.0
    %1164 = vmatpush.msra.mxu0 0.0
    %1165 = vmatpush.msra.mxu0 0.0
    %1166 = vmatpush.msra.mxu0 0.0
    %1167 = vmatpush.msra.mxu0 0.0
    %1168 = vmatpush.msra.mxu0 0.0
    %1169 = vmatpush.msra.mxu0 0.0
    %1170 = vmatpush.msra.mxu0 0.0
    %1171 = vmatpush.msra.mxu0 0.0
    %1172 = vmatpush.msra.mxu0 0.0
    %1173 = vmatpush.msra.mxu0 0.0
    %1174 = vmatpush.msra.mxu0 %v1151
    %1175 = vmatpush.msra.mxu0 %v1149
    %1176 = vmatmul.f32.gmra.mxu0 %v1155
    %v1177 = vpop.f32.mrf.mxu0
    %v1178 = vadd.f32 0.0, %v1177
    %1179 = vmatmul.f32.gmra.mxu0 %v1158
    %v1180 = vpop.f32.mrf.mxu0
    %v1181 = vadd.f32 0.0, %v1180
    %1182 = vdwg.mxu0
    %1185 = vrot.lane.b32.xlu0 %v350, 8
    %v1186 = vpop.permute.xlu0 %1185
    %1187 = vrot.lane.b32.xlu0 %v353, 8
    %v1188 = vpop.permute.xlu0 %1187
    %1193 = vrot.lane.b32.xlu0 %v488, 16
    %v1194 = vpop.permute.xlu0 %1193
    %1195 = vrot.lane.b32.xlu0 %v491, 16
    %v1196 = vpop.permute.xlu0 %1195
    %1201 = vrot.lane.b32.xlu0 %v626, 24
    %v1202 = vpop.permute.xlu0 %1201
    %1203 = vrot.lane.b32.xlu0 %v629, 24
    %v1204 = vpop.permute.xlu0 %1203
    %1209 = vrot.lane.b32.xlu0 %v764, 32
    %v1210 = vpop.permute.xlu0 %1209
    %1211 = vrot.lane.b32.xlu0 %v767, 32
    %v1212 = vpop.permute.xlu0 %1211
    %1217 = vrot.lane.b32.xlu0 %v902, 40
    %v1218 = vpop.permute.xlu0 %1217
    %1219 = vrot.lane.b32.xlu0 %v905, 40
    %v1220 = vpop.permute.xlu0 %1219
    %1225 = vrot.lane.b32.xlu0 %v1040, 48
    %v1226 = vpop.permute.xlu0 %1225
    %1227 = vrot.lane.b32.xlu0 %v1043, 48
    %v1228 = vpop.permute.xlu0 %1227
    %1233 = vrot.lane.b32.xlu0 %v1178, 56
    %v1234 = vpop.permute.xlu0 %1233
    %1235 = vrot.lane.b32.xlu0 %v1181, 56
    %v1236 = vpop.permute.xlu0 %1235
    %v1239 = vsel %vm31, %v210, %v1186
    %v1240 = vsel %vm31, %v213, %v1188
    %v1241 = vsel %vm163, %v1239, %v1194
    %v1242 = vsel %vm163, %v1240, %v1196
    %vm1243 = vcmask 195584
    %v1244 = vsel %vm1243, %v1241, %v1202
    %v1245 = vsel %vm1243, %v1242, %v1204
    %vm1246 = vcmask 261120
    %v1247 = vsel %vm1246, %v1244, %v1210
    %v1248 = vsel %vm1246, %v1245, %v1212
    %vm1249 = vcmask 326656
    %v1250 = vsel %vm1249, %v1247, %v1218
    %v1251 = vsel %vm1249, %v1248, %v1220
    %vm1252 = vcmask 392192
    %v1253 = vsel %vm1252, %v1250, %v1226
    %v1254 = vsel %vm1252, %v1251, %v1228
    %vm1255 = vcmask 457728
    %v1256 = vsel %vm1255, %v1253, %v1234
    %v1257 = vsel %vm1255, %v1254, %v1236
    %vm1258 = vcmask 523264
    %1259 = vst.msk [vmem:[#allocation2] sm:$0xff] %vm1258, %v1256
    %1260 = vst.msk [vmem:[#allocation2 + $0x8] sm:$0xff] %vm1258, %v1257
    // Predicated region
    $region26: #{tpu_custom_call.1} parent=1 // pred_check
      _
    $region27: #{tpu_custom_call.1} parent=1 // pred_check_branch
      %1262 = sbr.rel (0) target = $region29
    $region28: #{tpu_custom_call.1} parent=1 // pred_region
      %1264 = vsyncadd [#allocation3], 0
      %s1265 = sshll.u32 [#allocation2], 4
      %s1266 = int_to_ptr.vmem [resolvable:$true] %s1265
      %s1267 = sshll.u32 %s6, 4
      %s1268 = int_to_ptr.hbm [resolvable:$true] %s1267
      %1273 = dma.vmem_to_hbm [thread:$0]  %s1266, 256, %s1268, [#allocation3], 128, 128, 8
    $region29: #{tpu_custom_call.1} parent=1 // pred_fallthru
      _
    // Predicated region
    $region30: #{tpu_custom_call.1} parent=1 // pred_check
      _
    $region31: #{tpu_custom_call.1} parent=1 // pred_check_branch
      %1275 = sbr.rel (0) target = $region33
    $region32: #{tpu_custom_call.1} parent=1 // pred_region
      %1277 = dma.done [#allocation3], 256
    $region33: #{tpu_custom_call.1} parent=1 // pred_fallthru
      _
    %1278 = vsyncpa [#allocation3], 1

</llo_original>
